<compile_context>
chip_gen: v5e
topology: v5e:2x2
jax: 0.10.0
libtpu: 0.0.40
codegen_flags: <defaults>
</compile_context>

<pallas_src>
import functools

import jax
import jax.numpy as jnp
from jax.experimental import pallas as pl
from jax.experimental.pallas import tpu as pltpu

# TODO(synk): DifferentialMultiHeadSelfAttention's source was not provided; this
# implements the standard "Differential Transformer" attention
#   attn = softmax(q1 k1^T / sqrt(Dh)) - lambda * softmax(q2 k2^T / sqrt(Dh))
# with a fixed lambda (lambda_init) and an additive padding mask (no learned
# lambda re-parameterization / per-head GroupNorm).
LAMBDA_INIT = 0.5

# Dropout layers are identity at inference time (this script runs eval mode).


# ------------------------------ tiling helper -------------------------------

def _pick_tile(dim, target, align):
    """Largest tile <= target that divides `dim` and is a multiple of `align`;
    falls back to the full extent (a full-dim block is always legal)."""
    t = (min(target, dim) // align) * align
    while t >= align:
        if dim % t == 0:
            return t
        t -= align
    return dim


# ----------------------- tiled matmul (+bias, +ReLU) -------------------------

def _matmul_kernel(x_ref, w_ref, b_ref, o_ref, acc_ref, *, relu):
    @pl.when(pl.program_id(2) == 0)
    def _():
        acc_ref[...] = jnp.zeros_like(acc_ref)

    acc_ref[...] += jnp.dot(
        x_ref[...].astype(jnp.bfloat16),
        w_ref[...].astype(jnp.bfloat16),
        preferred_element_type=jnp.float32,
    )

    @pl.when(pl.program_id(2) == pl.num_programs(2) - 1)
    def _():
        y = acc_ref[...] + b_ref[...].astype(jnp.float32)
        if relu:
            y = jnp.maximum(y, 0.0)
        o_ref[...] = y.astype(o_ref.dtype)


def matmul_bias(x, w, b, *, relu=False, out_dtype=jnp.float32,
                tm=256, tn=512, tk=512):
    """y = act(x @ w + b).  x: (M, K), w: (K, N) (bf16), b: (1, N)."""
    M, K = x.shape
    N = w.shape[1]
    # Tiles sized so (tm*tk + tk*tn + tm*tn) double-buffered stays well inside
    # the default scoped-VMEM limit (also fits v7x's 64 MiB VMEM).
    tm = _pick_tile(M, tm, 8)
    tn = _pick_tile(N, tn, 128)
    tk = _pick_tile(K, tk, 128)
    grid = (M // tm, N // tn, K // tk)
    return pl.pallas_call(
        functools.partial(_matmul_kernel, relu=relu),
        out_shape=jax.ShapeDtypeStruct((M, N), out_dtype),
        grid=grid,
        in_specs=[
            pl.BlockSpec((tm, tk), lambda i, j, k: (i, k)),
            pl.BlockSpec((tk, tn), lambda i, j, k: (k, j)),
            pl.BlockSpec((1, tn), lambda i, j, k: (0, j)),
        ],
        out_specs=pl.BlockSpec((tm, tn), lambda i, j, k: (i, j)),
        scratch_shapes=[pltpu.VMEM((tm, tn), jnp.float32)],
        compiler_params=pltpu.CompilerParams(
            dimension_semantics=("parallel", "parallel", "arbitrary")),
    )(x, w, b)


# ------------- fused: matmul + bias (+ReLU) + residual + LayerNorm -----------

def _linear_res_ln_kernel(x_ref, w_ref, b_ref, r_ref, g_ref, be_ref,
                          o_ref, acc_ref, *, relu, eps):
    @pl.when(pl.program_id(1) == 0)
    def _():
        acc_ref[...] = jnp.zeros_like(acc_ref)

    acc_ref[...] += jnp.dot(
        x_ref[...].astype(jnp.bfloat16),
        w_ref[...].astype(jnp.bfloat16),
        preferred_element_type=jnp.float32,
    )

    @pl.when(pl.program_id(1) == pl.num_programs(1) - 1)
    def _():
        y = acc_ref[...] + b_ref[...].astype(jnp.float32)
        if relu:
            y = jnp.maximum(y, 0.0)
        y = y + r_ref[...].astype(jnp.float32)          # residual add
        mean = jnp.mean(y, axis=-1, keepdims=True)
        cent = y - mean
        var = jnp.mean(cent * cent, axis=-1, keepdims=True)
        o_ref[...] = (cent * jax.lax.rsqrt(var + eps) * g_ref[...]
                      + be_ref[...]).astype(o_ref.dtype)


def linear_residual_layernorm(x, w, b, resid, gamma, beta, *, relu=False,
                              eps=1e-5, tm=256, tk=512):
    """LayerNorm(resid + act(x @ w + b)) over the last axis.
    x: (M, K), w: (K, E) bf16, resid: (M, E) f32, gamma/beta: (1, E)."""
    M, K = x.shape
    E = w.shape[1]
    tm = _pick_tile(M, tm, 8)
    tk = _pick_tile(K, tk, 128)
    grid = (M // tm, K // tk)      # E kept whole: LayerNorm reduces over it
    return pl.pallas_call(
        functools.partial(_linear_res_ln_kernel, relu=relu, eps=eps),
        out_shape=jax.ShapeDtypeStruct((M, E), jnp.float32),
        grid=grid,
        in_specs=[
            pl.BlockSpec((tm, tk), lambda i, k: (i, k)),
            pl.BlockSpec((tk, E), lambda i, k: (k, 0)),
            pl.BlockSpec((1, E), lambda i, k: (0, 0)),
            pl.BlockSpec((tm, E), lambda i, k: (i, 0)),
            pl.BlockSpec((1, E), lambda i, k: (0, 0)),
            pl.BlockSpec((1, E), lambda i, k: (0, 0)),
        ],
        out_specs=pl.BlockSpec((tm, E), lambda i, k: (i, 0)),
        scratch_shapes=[pltpu.VMEM((tm, E), jnp.float32)],
        compiler_params=pltpu.CompilerParams(
            dimension_semantics=("parallel", "arbitrary")),
    )(x, w, b, resid, gamma, beta)


# ------------------------- differential attention ----------------------------

def _diff_attn_kernel(bias_ref, qkv_ref, o_ref, *, H, Dh, Dm, lam, scale):
    bias = bias_ref[...]                       # (1, T) f32, broadcast over rows
    qkv = qkv_ref[...]                         # (T, 5*Dm) bf16: q1|q2|k1|k2|v
    scale_b = jnp.asarray(scale, dtype=jnp.bfloat16)

    def _softmax(s):                           # f32 scores throughout
        e = jnp.exp(s - jnp.max(s, axis=-1, keepdims=True))
        return e * pl.reciprocal(jnp.sum(e, axis=-1, keepdims=True), approx=True)

    for h in range(H):                         # static unroll over heads
        lo, hi = h * Dh, (h + 1) * Dh
        q1 = qkv[:, 0 * Dm + lo:0 * Dm + hi] * scale_b   # scale folded into q
        q2 = qkv[:, 1 * Dm + lo:1 * Dm + hi] * scale_b
        k1 = qkv[:, 2 * Dm + lo:2 * Dm + hi]
        k2 = qkv[:, 3 * Dm + lo:3 * Dm + hi]
        v = qkv[:, 4 * Dm + lo:4 * Dm + hi]
        s1 = jnp.dot(q1, k1.T, preferred_element_type=jnp.float32) + bias
        s2 = jnp.dot(q2, k2.T, preferred_element_type=jnp.float32) + bias
        p = _softmax(s1) - lam * _softmax(s2)
        out_h = jnp.dot(p.astype(jnp.bfloat16), v,
                        preferred_element_type=jnp.float32)
        o_ref[:, lo:hi] = out_h.astype(o_ref.dtype)


def diff_attention(qkv, bias, num_heads, d_model):
    """qkv: (B, T, 5*d_model) bf16; bias: (B, 1, T) f32 (0 valid / -1e9 pad).
    Returns (B, T, d_model) bf16 — same head-major column layout as PyTorch."""
    B, T, five_dm = qkv.shape
    Dh = d_model // num_heads
    scale = 1.0 / (Dh ** 0.5)
    return pl.pallas_call(
        functools.partial(_diff_attn_kernel, H=num_heads, Dh=Dh, Dm=d_model,
                          lam=LAMBDA_INIT, scale=scale),
        out_shape=jax.ShapeDtypeStruct((B, T, d_model), jnp.bfloat16),
        grid=(B,),
        in_specs=[
            pl.BlockSpec((None, 1, T), lambda b: (b, 0, 0)),
            pl.BlockSpec((None, T, five_dm), lambda b: (b, 0, 0)),
        ],
        out_specs=pl.BlockSpec((None, T, d_model), lambda b: (b, 0, 0)),
        compiler_params=pltpu.CompilerParams(
            dimension_semantics=("parallel",)),
    )(bias, qkv)


# ---------------------------- parameters / glue -----------------------------

def init_params(key, num_layers, vocab_size, embed_dim, d_model, max_seq_len,
                ffwd_dim):
    def dense(k, shape, fan_in):
        lim = 1.0 / (fan_in ** 0.5)
        return jax.random.uniform(k, shape, jnp.float32, -lim, lim)

    keys = iter(jax.random.split(key, 2 + num_layers * 8))
    params = {
        "tok_emb": jax.random.normal(next(keys), (vocab_size, embed_dim),
                                     jnp.float32),
        "pos_emb": jax.random.normal(next(keys), (max_seq_len, embed_dim),
                                     jnp.float32),
        "layers": [],
    }
    for _ in range(num_layers):
        # Fuse q1|q2|k1|k2|v into one (E, 5*d_model) weight once at setup.
        wq1 = dense(next(keys), (embed_dim, d_model), embed_dim)
        wq2 = dense(next(keys), (embed_dim, d_model), embed_dim)
        wk1 = dense(next(keys), (embed_dim, d_model), embed_dim)
        wk2 = dense(next(keys), (embed_dim, d_model), embed_dim)
        wv = dense(next(keys), (embed_dim, d_model), embed_dim)
        layer = {
            "wqkv": jnp.concatenate([wq1, wq2, wk1, wk2, wv],
                                    axis=1).astype(jnp.bfloat16),
            "bqkv": jnp.zeros((1, 5 * d_model), jnp.float32),
            "wo": dense(next(keys), (d_model, embed_dim),
                        d_model).astype(jnp.bfloat16),
            "bo": jnp.zeros((1, embed_dim), jnp.float32),
            "ln1_g": jnp.ones((1, embed_dim), jnp.float32),
            "ln1_b": jnp.zeros((1, embed_dim), jnp.float32),
            "ln2_g": jnp.ones((1, embed_dim), jnp.float32),
            "ln2_b": jnp.zeros((1, embed_dim), jnp.float32),
            "w1": dense(next(keys), (embed_dim, ffwd_dim),
                        embed_dim).astype(jnp.bfloat16),
            "b1": jnp.zeros((1, ffwd_dim), jnp.float32),
            "w2": dense(next(keys), (ffwd_dim, embed_dim),
                        ffwd_dim).astype(jnp.bfloat16),
            "b2": jnp.zeros((1, embed_dim), jnp.float32),
        }
        params["layers"].append(layer)
    return params


def encoder_forward(params, tokens, padding_mask, num_heads):
    B, T = tokens.shape
    E = params["tok_emb"].shape[1]
    # token + position embedding (gather stays as XLA glue)
    tok = jnp.take(params["tok_emb"], tokens, axis=0)           # (B, T, E)
    pos = params["pos_emb"][:T][None, :, :]                     # (1, T, E)
    x2d = (tok + pos).astype(jnp.float32).reshape(B * T, E)
    # additive mask bias hoisted out of the per-(batch,head) kernel grid:
    # 0 for real tokens, -1e9 for padding, shape (B, 1, T), kept in f32.
    bias = (padding_mask.astype(jnp.float32) - 1.0)[:, None, :] * 1e9

    for lp in params["layers"]:
        d_model = lp["wo"].shape[0]

        # fused Q1/Q2/K1/K2/V projection: one tiled bf16 matmul, lane-dense out
        qkv = matmul_bias(x2d, lp["wqkv"], lp["bqkv"],
                          out_dtype=jnp.bfloat16)                # (B*T, 5*Dm)
        qkv = qkv.reshape(B, T, 5 * d_model)                     # free reshape

        # differential attention, heads sliced on the lane axis (no transposes)
        attn = diff_attention(qkv, bias, num_heads, d_model)     # (B, T, Dm)
        attn2d = attn.reshape(B * T, d_model)

        # ln1(x + Wo(attn) + bo): matmul + residual + LayerNorm fused
        x2d = linear_residual_layernorm(attn2d, lp["wo"], lp["bo"], x2d,
                                        lp["ln1_g"], lp["ln1_b"], relu=False)

        # FeedForward: relu(linear1) -> relu(linear2); dropout = identity (eval)
        h = matmul_bias(x2d, lp["w1"], lp["b1"], relu=True,
                        out_dtype=jnp.bfloat16)                  # (B*T, ffwd)
        # ln2(x + relu(W2 h + b2)): matmul + ReLU + residual + LayerNorm fused
        x2d = linear_residual_layernorm(h, lp["w2"], lp["b2"], x2d,
                                        lp["ln2_g"], lp["ln2_b"], relu=True)

    # final dropout = identity at inference
    return x2d.reshape(B, T, E)


if __name__ == "__main__":
    num_layers = 2
    vocab_size = 32
    embed_dim = 32
    d_model = 32
    max_seq_len = 16
    num_heads = 4
    ffwd_dim = 64
    B, T = 2, 8

    key = jax.random.PRNGKey(0)
    pkey, tkey = jax.random.split(key)
    params = init_params(pkey, num_layers, vocab_size, embed_dim, d_model,
                         max_seq_len, ffwd_dim)
    tokens = jax.random.randint(tkey, (B, T), 0, vocab_size, dtype=jnp.int32)
    # 1 = real token, 0 = padding; pad out the last two positions
    padding_mask = jnp.ones((B, T), dtype=jnp.int32).at[:, T - 2:].set(0)

    fwd = jax.jit(functools.partial(encoder_forward, num_heads=num_heads))
    out = fwd(params, tokens, padding_mask)
    jax.block_until_ready(out)
    assert out.shape == (B, T, embed_dim) and out.dtype == jnp.float32
    assert bool(jnp.all(jnp.isfinite(out)))
    print("KERNEL_OK")
</pallas_src>

<mosaic_0001>
module attributes {stable_mosaic.version = 11 : i64} {
  func.func @_matmul_kernel(%arg0: i32, %arg1: i32, %arg2: i32, %arg3: memref<16x32xf32, #tpu.memory_space<vmem>>, %arg4: memref<32x64xbf16, #tpu.memory_space<vmem>>, %arg5: memref<1x64xf32, #tpu.memory_space<vmem>>, %arg6: memref<16x64xbf16, #tpu.memory_space<vmem>>, %arg7: memref<16x64xf32, #tpu.memory_space<vmem>>) attributes {dimension_semantics = [#tpu.dimension_semantics<parallel>, #tpu.dimension_semantics<parallel>, #tpu.dimension_semantics<arbitrary>], iteration_bounds = array<i64: 1, 1, 1>, scalar_prefetch = 0 : i64, scratch_operands = 1 : i64, tpu.core_type = #tpu.core_type<tc>, window_params = [{transform_indices = @transform_0, window_bounds = array<i64: 16, 32>}, {transform_indices = @transform_1, window_bounds = array<i64: 32, 64>}, {transform_indices = @transform_2, window_bounds = array<i64: 1, 64>}, {transform_indices = @transform_3, window_bounds = array<i64: 16, 64>}]} {
    %c0_i32 = arith.constant 0 : i32
    %0 = arith.cmpi eq, %arg2, %c0_i32 : i32
    %1 = arith.extui %0 : i1 to i32
    %c0_i32_0 = arith.constant 0 : i32
    %2 = arith.cmpi ne, %1, %c0_i32_0 : i32
    scf.if %2 {
      %cst_10 = arith.constant 0.000000e+00 : f32
      %13 = vector.broadcast %cst_10 : f32 to vector<16x64xf32>
      %c0_11 = arith.constant 0 : index
      %c0_12 = arith.constant 0 : index
      %14 = vector.load %arg7[%c0_11, %c0_12] : memref<16x64xf32, #tpu.memory_space<vmem>>, vector<16x64xf32>
      tpu.vector_store %arg7[%c0_11, %c0_12], %13 {strides = array<i32>} : memref<16x64xf32, #tpu.memory_space<vmem>>, vector<16x64xf32>,
    } else {
    }
    %c0 = arith.constant 0 : index
    %c0_1 = arith.constant 0 : index
    %3 = vector.load %arg7[%c0, %c0_1] : memref<16x64xf32, #tpu.memory_space<vmem>>, vector<16x64xf32>
    %c0_2 = arith.constant 0 : index
    %c0_3 = arith.constant 0 : index
    %4 = vector.load %arg3[%c0_2, %c0_3] : memref<16x32xf32, #tpu.memory_space<vmem>>, vector<16x32xf32>
    %5 = arith.truncf %4 : vector<16x32xf32> to vector<16x32xbf16>
    %c0_4 = arith.constant 0 : index
    %c0_5 = arith.constant 0 : index
    %6 = vector.load %arg4[%c0_4, %c0_5] : memref<32x64xbf16, #tpu.memory_space<vmem>>, vector<32x64xbf16>
    %cst = arith.constant dense<0.000000e+00> : vector<16x64xf32>
    %7 = tpu.matmul %5, %6, %cst {dimension_numbers = #tpu.dot_dimension_numbers<[1], [0], [0], [1], [0, 0, 1, 1], [], []>} : vector<16x32xbf16>, vector<32x64xbf16>, vector<16x64xf32> -> vector<16x64xf32>
    %8 = arith.addf %3, %7 : vector<16x64xf32>
    %c0_6 = arith.constant 0 : index
    %c0_7 = arith.constant 0 : index
    %9 = vector.load %arg7[%c0_6, %c0_7] : memref<16x64xf32, #tpu.memory_space<vmem>>, vector<16x64xf32>
    tpu.vector_store %arg7[%c0_6, %c0_7], %8 {strides = array<i32>} : memref<16x64xf32, #tpu.memory_space<vmem>>, vector<16x64xf32>,
    %c0_i32_8 = arith.constant 0 : i32
    %10 = arith.cmpi eq, %arg2, %c0_i32_8 : i32
    %11 = arith.extui %10 : i1 to i32
    %c0_i32_9 = arith.constant 0 : i32
    %12 = arith.cmpi ne, %11, %c0_i32_9 : i32
    scf.if %12 {
      %c0_10 = arith.constant 0 : index
      %c0_11 = arith.constant 0 : index
      %13 = vector.load %arg7[%c0_10, %c0_11] : memref<16x64xf32, #tpu.memory_space<vmem>>, vector<16x64xf32>
      %c0_12 = arith.constant 0 : index
      %c0_13 = arith.constant 0 : index
      %14 = vector.load %arg5[%c0_12, %c0_13] : memref<1x64xf32, #tpu.memory_space<vmem>>, vector<1x64xf32>
      %15 = vector.broadcast %14 : vector<1x64xf32> to vector<16x64xf32>
      %16 = arith.addf %13, %15 : vector<16x64xf32>
      %cst_14 = arith.constant 0.000000e+00 : f32
      %17 = vector.broadcast %cst_14 : f32 to vector<16x64xf32>
      %18 = arith.maximumf %16, %17 : vector<16x64xf32>
      %19 = arith.truncf %18 : vector<16x64xf32> to vector<16x64xbf16>
      %c0_15 = arith.constant 0 : index
      %c0_16 = arith.constant 0 : index
      %20 = vector.load %arg6[%c0_15, %c0_16] : memref<16x64xbf16, #tpu.memory_space<vmem>>, vector<16x64xbf16>
      tpu.vector_store %arg6[%c0_15, %c0_16], %19 {strides = array<i32>} : memref<16x64xbf16, #tpu.memory_space<vmem>>, vector<16x64xbf16>,
    } else {
    }
    return
  }
  func.func @transform_0(%arg0: i32, %arg1: i32, %arg2: i32) -> (i32, i32) {
    %c0_i32 = arith.constant 0 : i32
    return %arg0, %arg2 : i32, i32
  }
  func.func @transform_1(%arg0: i32, %arg1: i32, %arg2: i32) -> (i32, i32) {
    %c0_i32 = arith.constant 0 : i32
    return %arg2, %arg1 : i32, i32
  }
  func.func @transform_2(%arg0: i32, %arg1: i32, %arg2: i32) -> (i32, i32) {
    %c0_i32 = arith.constant 0 : i32
    %c0_i32_0 = arith.constant 0 : i32
    return %c0_i32, %arg1 : i32, i32
  }
  func.func @transform_3(%arg0: i32, %arg1: i32, %arg2: i32) -> (i32, i32) {
    %c0_i32 = arith.constant 0 : i32
    return %arg0, %arg1 : i32, i32
  }
}

module attributes {stable_mosaic.version = 11 : i64} {
  func.func @_linear_res_ln_kernel(%arg0: i32, %arg1: i32, %arg2: memref<16x32xbf16, #tpu.memory_space<vmem>>, %arg3: memref<32x32xbf16, #tpu.memory_space<vmem>>, %arg4: memref<1x32xf32, #tpu.memory_space<vmem>>, %arg5: memref<16x32xf32, #tpu.memory_space<vmem>>, %arg6: memref<1x32xf32, #tpu.memory_space<vmem>>, %arg7: memref<1x32xf32, #tpu.memory_space<vmem>>, %arg8: memref<16x32xf32, #tpu.memory_space<vmem>>, %arg9: memref<16x32xf32, #tpu.memory_space<vmem>>) attributes {dimension_semantics = [#tpu.dimension_semantics<parallel>, #tpu.dimension_semantics<arbitrary>], iteration_bounds = array<i64: 1, 1>, scalar_prefetch = 0 : i64, scratch_operands = 1 : i64, tpu.core_type = #tpu.core_type<tc>, window_params = [{transform_indices = @transform_0, window_bounds = array<i64: 16, 32>}, {transform_indices = @transform_1, window_bounds = array<i64: 32, 32>}, {pipeline_mode = #tpu.pipeline_mode<synchronous>, transform_indices = @transform_2, window_bounds = array<i64: 1, 32>}, {transform_indices = @transform_3, window_bounds = array<i64: 16, 32>}, {pipeline_mode = #tpu.pipeline_mode<synchronous>, transform_indices = @transform_4, window_bounds = array<i64: 1, 32>}, {pipeline_mode = #tpu.pipeline_mode<synchronous>, transform_indices = @transform_5, window_bounds = array<i64: 1, 32>}, {transform_indices = @transform_6, window_bounds = array<i64: 16, 32>}]} {
    %c0_i32 = arith.constant 0 : i32
    %0 = arith.cmpi eq, %arg1, %c0_i32 : i32
    %1 = arith.extui %0 : i1 to i32
    %c0_i32_0 = arith.constant 0 : i32
    %2 = arith.cmpi ne, %1, %c0_i32_0 : i32
    scf.if %2 {
      %cst_10 = arith.constant 0.000000e+00 : f32
      %12 = vector.broadcast %cst_10 : f32 to vector<16x32xf32>
      %c0_11 = arith.constant 0 : index
      %c0_12 = arith.constant 0 : index
      %13 = vector.load %arg9[%c0_11, %c0_12] : memref<16x32xf32, #tpu.memory_space<vmem>>, vector<16x32xf32>
      tpu.vector_store %arg9[%c0_11, %c0_12], %12 {strides = array<i32>} : memref<16x32xf32, #tpu.memory_space<vmem>>, vector<16x32xf32>,
    } else {
    }
    %c0 = arith.constant 0 : index
    %c0_1 = arith.constant 0 : index
    %3 = vector.load %arg9[%c0, %c0_1] : memref<16x32xf32, #tpu.memory_space<vmem>>, vector<16x32xf32>
    %c0_2 = arith.constant 0 : index
    %c0_3 = arith.constant 0 : index
    %4 = vector.load %arg2[%c0_2, %c0_3] : memref<16x32xbf16, #tpu.memory_space<vmem>>, vector<16x32xbf16>
    %c0_4 = arith.constant 0 : index
    %c0_5 = arith.constant 0 : index
    %5 = vector.load %arg3[%c0_4, %c0_5] : memref<32x32xbf16, #tpu.memory_space<vmem>>, vector<32x32xbf16>
    %cst = arith.constant dense<0.000000e+00> : vector<16x32xf32>
    %6 = tpu.matmul %4, %5, %cst {dimension_numbers = #tpu.dot_dimension_numbers<[1], [0], [0], [1], [0, 0, 1, 1], [], []>} : vector<16x32xbf16>, vector<32x32xbf16>, vector<16x32xf32> -> vector<16x32xf32>
    %7 = arith.addf %3, %6 : vector<16x32xf32>
    %c0_6 = arith.constant 0 : index
    %c0_7 = arith.constant 0 : index
    %8 = vector.load %arg9[%c0_6, %c0_7] : memref<16x32xf32, #tpu.memory_space<vmem>>, vector<16x32xf32>
    tpu.vector_store %arg9[%c0_6, %c0_7], %7 {strides = array<i32>} : memref<16x32xf32, #tpu.memory_space<vmem>>, vector<16x32xf32>,
    %c0_i32_8 = arith.constant 0 : i32
    %9 = arith.cmpi eq, %arg1, %c0_i32_8 : i32
    %10 = arith.extui %9 : i1 to i32
    %c0_i32_9 = arith.constant 0 : i32
    %11 = arith.cmpi ne, %10, %c0_i32_9 : i32
    scf.if %11 {
      %c0_10 = arith.constant 0 : index
      %c0_11 = arith.constant 0 : index
      %12 = vector.load %arg9[%c0_10, %c0_11] : memref<16x32xf32, #tpu.memory_space<vmem>>, vector<16x32xf32>
      %c0_12 = arith.constant 0 : index
      %c0_13 = arith.constant 0 : index
      %13 = vector.load %arg4[%c0_12, %c0_13] : memref<1x32xf32, #tpu.memory_space<vmem>>, vector<1x32xf32>
      %14 = vector.broadcast %13 : vector<1x32xf32> to vector<16x32xf32>
      %15 = arith.addf %12, %14 : vector<16x32xf32>
      %c0_14 = arith.constant 0 : index
      %c0_15 = arith.constant 0 : index
      %16 = vector.load %arg5[%c0_14, %c0_15] : memref<16x32xf32, #tpu.memory_space<vmem>>, vector<16x32xf32>
      %17 = arith.addf %15, %16 : vector<16x32xf32>
      %cst_16 = arith.constant dense<0.000000e+00> : vector<16xf32>
      %18 = vector.multi_reduction <add>, %17, %cst_16 [1] : vector<16x32xf32> to vector<16xf32>
      %19 = vector.shape_cast %18 : vector<16xf32> to vector<16x1xf32>
      %cst_17 = arith.constant 3.200000e+01 : f32
      %20 = vector.broadcast %cst_17 : f32 to vector<16x1xf32>
      %21 = arith.divf %19, %20 : vector<16x1xf32>
      %22 = vector.broadcast %21 : vector<16x1xf32> to vector<16x32xf32>
      %23 = arith.subf %17, %22 : vector<16x32xf32>
      %24 = arith.mulf %23, %23 : vector<16x32xf32>
      %cst_18 = arith.constant dense<0.000000e+00> : vector<16xf32>
      %25 = vector.multi_reduction <add>, %24, %cst_18 [1] : vector<16x32xf32> to vector<16xf32>
      %26 = vector.shape_cast %25 : vector<16xf32> to vector<16x1xf32>
      %cst_19 = arith.constant 3.200000e+01 : f32
      %27 = vector.broadcast %cst_19 : f32 to vector<16x1xf32>
      %28 = arith.divf %26, %27 : vector<16x1xf32>
      %cst_20 = arith.constant 9.99999974E-6 : f32
      %29 = vector.broadcast %cst_20 : f32 to vector<16x1xf32>
      %30 = arith.addf %28, %29 : vector<16x1xf32>
      %31 = math.rsqrt %30 : vector<16x1xf32>
      %32 = vector.broadcast %31 : vector<16x1xf32> to vector<16x32xf32>
      %33 = arith.mulf %23, %32 : vector<16x32xf32>
      %c0_21 = arith.constant 0 : index
      %c0_22 = arith.constant 0 : index
      %34 = vector.load %arg6[%c0_21, %c0_22] : memref<1x32xf32, #tpu.memory_space<vmem>>, vector<1x32xf32>
      %35 = vector.broadcast %34 : vector<1x32xf32> to vector<16x32xf32>
      %36 = arith.mulf %33, %35 : vector<16x32xf32>
      %c0_23 = arith.constant 0 : index
      %c0_24 = arith.constant 0 : index
      %37 = vector.load %arg7[%c0_23, %c0_24] : memref<1x32xf32, #tpu.memory_space<vmem>>, vector<1x32xf32>
      %38 = vector.broadcast %37 : vector<1x32xf32> to vector<16x32xf32>
      %39 = arith.addf %36, %38 : vector<16x32xf32>
      %c0_25 = arith.constant 0 : index
      %c0_26 = arith.constant 0 : index
      %40 = vector.load %arg8[%c0_25, %c0_26] : memref<16x32xf32, #tpu.memory_space<vmem>>, vector<16x32xf32>
      tpu.vector_store %arg8[%c0_25, %c0_26], %39 {strides = array<i32>} : memref<16x32xf32, #tpu.memory_space<vmem>>, vector<16x32xf32>,
    } else {
    }
    return
  }
  func.func @transform_0(%arg0: i32, %arg1: i32) -> (i32, i32) {
    %c0_i32 = arith.constant 0 : i32
    return %arg0, %arg1 : i32, i32
  }
  func.func @transform_1(%arg0: i32, %arg1: i32) -> (i32, i32) {
    %c0_i32 = arith.constant 0 : i32
    %c0_i32_0 = arith.constant 0 : i32
    return %arg1, %c0_i32 : i32, i32
  }
  func.func @transform_2(%arg0: i32, %arg1: i32) -> (i32, i32) {
    %c0_i32 = arith.constant 0 : i32
    %c0_i32_0 = arith.constant 0 : i32
    %c0_i32_1 = arith.constant 0 : i32
    return %c0_i32, %c0_i32_0 : i32, i32
  }
  func.func @transform_3(%arg0: i32, %arg1: i32) -> (i32, i32) {
    %c0_i32 = arith.constant 0 : i32
    %c0_i32_0 = arith.constant 0 : i32
    return %arg0, %c0_i32 : i32, i32
  }
  func.func @transform_4(%arg0: i32, %arg1: i32) -> (i32, i32) {
    %c0_i32 = arith.constant 0 : i32
    %c0_i32_0 = arith.constant 0 : i32
    %c0_i32_1 = arith.constant 0 : i32
    return %c0_i32, %c0_i32_0 : i32, i32
  }
  func.func @transform_5(%arg0: i32, %arg1: i32) -> (i32, i32) {
    %c0_i32 = arith.constant 0 : i32
    %c0_i32_0 = arith.constant 0 : i32
    %c0_i32_1 = arith.constant 0 : i32
    return %c0_i32, %c0_i32_0 : i32, i32
  }
  func.func @transform_6(%arg0: i32, %arg1: i32) -> (i32, i32) {
    %c0_i32 = arith.constant 0 : i32
    %c0_i32_0 = arith.constant 0 : i32
    return %arg0, %c0_i32 : i32, i32
  }
}

module attributes {stable_mosaic.version = 11 : i64} {
  func.func @_diff_attn_kernel(%arg0: i32, %arg1: memref<1x1x8xf32, #tpu.memory_space<vmem>>, %arg2: memref<1x8x160xbf16, #tpu.memory_space<vmem>>, %arg3: memref<1x8x32xbf16, #tpu.memory_space<vmem>>) attributes {dimension_semantics = [#tpu.dimension_semantics<parallel>], iteration_bounds = array<i64: 2>, scalar_prefetch = 0 : i64, scratch_operands = 0 : i64, tpu.core_type = #tpu.core_type<tc>, window_params = [{transform_indices = @transform_0, window_bounds = array<i64: 1, 1, 8>}, {transform_indices = @transform_1, window_bounds = array<i64: 1, 8, 160>}, {transform_indices = @transform_2, window_bounds = array<i64: 1, 8, 32>}]} {
    %c0 = arith.constant 0 : index
    %c0_0 = arith.constant 0 : index
    %c0_1 = arith.constant 0 : index
    %0 = vector.load %arg1[%c0, %c0_0, %c0_1] : memref<1x1x8xf32, #tpu.memory_space<vmem>>, vector<1x1x8xf32>
    %1 = vector.shape_cast %0 : vector<1x1x8xf32> to vector<1x8xf32>
    %c0_2 = arith.constant 0 : index
    %c0_3 = arith.constant 0 : index
    %c0_4 = arith.constant 0 : index
    %2 = vector.load %arg2[%c0_2, %c0_3, %c0_4] : memref<1x8x160xbf16, #tpu.memory_space<vmem>>, vector<1x8x160xbf16>
    %3 = vector.shape_cast %2 : vector<1x8x160xbf16> to vector<8x160xbf16>
    %4 = vector.extract_strided_slice %3 {offsets = [0, 0], sizes = [8, 8], strides = [1, 1]} : vector<8x160xbf16> to vector<8x8xbf16>
    %cst = arith.constant 3.535160e-01 : bf16
    %5 = vector.broadcast %cst : bf16 to vector<8x8xbf16>
    %6 = arith.mulf %4, %5 : vector<8x8xbf16>
    %7 = vector.extract_strided_slice %3 {offsets = [0, 32], sizes = [8, 8], strides = [1, 1]} : vector<8x160xbf16> to vector<8x8xbf16>
    %cst_5 = arith.constant 3.535160e-01 : bf16
    %8 = vector.broadcast %cst_5 : bf16 to vector<8x8xbf16>
    %9 = arith.mulf %7, %8 : vector<8x8xbf16>
    %10 = vector.extract_strided_slice %3 {offsets = [0, 64], sizes = [8, 8], strides = [1, 1]} : vector<8x160xbf16> to vector<8x8xbf16>
    %11 = vector.extract_strided_slice %3 {offsets = [0, 96], sizes = [8, 8], strides = [1, 1]} : vector<8x160xbf16> to vector<8x8xbf16>
    %12 = vector.extract_strided_slice %3 {offsets = [0, 128], sizes = [8, 8], strides = [1, 1]} : vector<8x160xbf16> to vector<8x8xbf16>
    %13 = tpu.transpose %10, [1, 0] : vector<8x8xbf16> -> vector<8x8xbf16>
    %cst_6 = arith.constant dense<0.000000e+00> : vector<8x8xf32>
    %14 = tpu.matmul %6, %13, %cst_6 {dimension_numbers = #tpu.dot_dimension_numbers<[1], [0], [0], [1], [0, 0, 1, 1], [], []>} : vector<8x8xbf16>, vector<8x8xbf16>, vector<8x8xf32> -> vector<8x8xf32>
    %15 = vector.broadcast %1 : vector<1x8xf32> to vector<8x8xf32>
    %16 = arith.addf %14, %15 : vector<8x8xf32>
    %17 = tpu.transpose %11, [1, 0] : vector<8x8xbf16> -> vector<8x8xbf16>
    %cst_7 = arith.constant dense<0.000000e+00> : vector<8x8xf32>
    %18 = tpu.matmul %9, %17, %cst_7 {dimension_numbers = #tpu.dot_dimension_numbers<[1], [0], [0], [1], [0, 0, 1, 1], [], []>} : vector<8x8xbf16>, vector<8x8xbf16>, vector<8x8xf32> -> vector<8x8xf32>
    %19 = vector.broadcast %1 : vector<1x8xf32> to vector<8x8xf32>
    %20 = arith.addf %18, %19 : vector<8x8xf32>
    %cst_8 = arith.constant dense<0xFF800000> : vector<8xf32>
    %21 = vector.multi_reduction <maximumf>, %16, %cst_8 [1] : vector<8x8xf32> to vector<8xf32>
    %22 = vector.shape_cast %21 : vector<8xf32> to vector<8x1xf32>
    %23 = vector.broadcast %22 : vector<8x1xf32> to vector<8x8xf32>
    %24 = arith.subf %16, %23 : vector<8x8xf32>
    %25 = math.exp %24 : vector<8x8xf32>
    %cst_9 = arith.constant dense<0.000000e+00> : vector<8xf32>
    %26 = vector.multi_reduction <add>, %25, %cst_9 [1] : vector<8x8xf32> to vector<8xf32>
    %27 = vector.shape_cast %26 : vector<8xf32> to vector<8x1xf32>
    %28 = tpu.reciprocal %27 {approx = true} : vector<8x1xf32> -> vector<8x1xf32>
    %29 = vector.broadcast %28 : vector<8x1xf32> to vector<8x8xf32>
    %30 = arith.mulf %25, %29 : vector<8x8xf32>
    %cst_10 = arith.constant dense<0xFF800000> : vector<8xf32>
    %31 = vector.multi_reduction <maximumf>, %20, %cst_10 [1] : vector<8x8xf32> to vector<8xf32>
    %32 = vector.shape_cast %31 : vector<8xf32> to vector<8x1xf32>
    %33 = vector.broadcast %32 : vector<8x1xf32> to vector<8x8xf32>
    %34 = arith.subf %20, %33 : vector<8x8xf32>
    %35 = math.exp %34 : vector<8x8xf32>
    %cst_11 = arith.constant dense<0.000000e+00> : vector<8xf32>
    %36 = vector.multi_reduction <add>, %35, %cst_11 [1] : vector<8x8xf32> to vector<8xf32>
    %37 = vector.shape_cast %36 : vector<8xf32> to vector<8x1xf32>
    %38 = tpu.reciprocal %37 {approx = true} : vector<8x1xf32> -> vector<8x1xf32>
    %39 = vector.broadcast %38 : vector<8x1xf32> to vector<8x8xf32>
    %40 = arith.mulf %35, %39 : vector<8x8xf32>
    %cst_12 = arith.constant 5.000000e-01 : f32
    %41 = vector.broadcast %cst_12 : f32 to vector<8x8xf32>
    %42 = arith.mulf %41, %40 : vector<8x8xf32>
    %43 = arith.subf %30, %42 : vector<8x8xf32>
    %44 = arith.truncf %43 : vector<8x8xf32> to vector<8x8xbf16>
    %cst_13 = arith.constant dense<0.000000e+00> : vector<8x8xf32>
    %45 = tpu.matmul %44, %12, %cst_13 {dimension_numbers = #tpu.dot_dimension_numbers<[1], [0], [0], [1], [0, 0, 1, 1], [], []>} : vector<8x8xbf16>, vector<8x8xbf16>, vector<8x8xf32> -> vector<8x8xf32>
    %46 = arith.truncf %45 : vector<8x8xf32> to vector<8x8xbf16>
    %c0_14 = arith.constant 0 : index
    %c0_15 = arith.constant 0 : index
    %c0_16 = arith.constant 0 : index
    %47 = vector.load %arg3[%c0_14, %c0_15, %c0_16] : memref<1x8x32xbf16, #tpu.memory_space<vmem>>, vector<1x8x8xbf16>
    %48 = vector.shape_cast %47 : vector<1x8x8xbf16> to vector<8x8xbf16>
    %49 = vector.shape_cast %46 : vector<8x8xbf16> to vector<1x8x8xbf16>
    tpu.vector_store %arg3[%c0_14, %c0_15, %c0_16], %49 {strides = array<i32>} : memref<1x8x32xbf16, #tpu.memory_space<vmem>>, vector<1x8x8xbf16>,
    %50 = vector.extract_strided_slice %3 {offsets = [0, 8], sizes = [8, 8], strides = [1, 1]} : vector<8x160xbf16> to vector<8x8xbf16>
    %cst_17 = arith.constant 3.535160e-01 : bf16
    %51 = vector.broadcast %cst_17 : bf16 to vector<8x8xbf16>
    %52 = arith.mulf %50, %51 : vector<8x8xbf16>
    %53 = vector.extract_strided_slice %3 {offsets = [0, 40], sizes = [8, 8], strides = [1, 1]} : vector<8x160xbf16> to vector<8x8xbf16>
    %cst_18 = arith.constant 3.535160e-01 : bf16
    %54 = vector.broadcast %cst_18 : bf16 to vector<8x8xbf16>
    %55 = arith.mulf %53, %54 : vector<8x8xbf16>
    %56 = vector.extract_strided_slice %3 {offsets = [0, 72], sizes = [8, 8], strides = [1, 1]} : vector<8x160xbf16> to vector<8x8xbf16>
    %57 = vector.extract_strided_slice %3 {offsets = [0, 104], sizes = [8, 8], strides = [1, 1]} : vector<8x160xbf16> to vector<8x8xbf16>
    %58 = vector.extract_strided_slice %3 {offsets = [0, 136], sizes = [8, 8], strides = [1, 1]} : vector<8x160xbf16> to vector<8x8xbf16>
    %59 = tpu.transpose %56, [1, 0] : vector<8x8xbf16> -> vector<8x8xbf16>
    %cst_19 = arith.constant dense<0.000000e+00> : vector<8x8xf32>
    %60 = tpu.matmul %52, %59, %cst_19 {dimension_numbers = #tpu.dot_dimension_numbers<[1], [0], [0], [1], [0, 0, 1, 1], [], []>} : vector<8x8xbf16>, vector<8x8xbf16>, vector<8x8xf32> -> vector<8x8xf32>
    %61 = vector.broadcast %1 : vector<1x8xf32> to vector<8x8xf32>
    %62 = arith.addf %60, %61 : vector<8x8xf32>
    %63 = tpu.transpose %57, [1, 0] : vector<8x8xbf16> -> vector<8x8xbf16>
    %cst_20 = arith.constant dense<0.000000e+00> : vector<8x8xf32>
    %64 = tpu.matmul %55, %63, %cst_20 {dimension_numbers = #tpu.dot_dimension_numbers<[1], [0], [0], [1], [0, 0, 1, 1], [], []>} : vector<8x8xbf16>, vector<8x8xbf16>, vector<8x8xf32> -> vector<8x8xf32>
    %65 = vector.broadcast %1 : vector<1x8xf32> to vector<8x8xf32>
    %66 = arith.addf %64, %65 : vector<8x8xf32>
    %cst_21 = arith.constant dense<0xFF800000> : vector<8xf32>
    %67 = vector.multi_reduction <maximumf>, %62, %cst_21 [1] : vector<8x8xf32> to vector<8xf32>
    %68 = vector.shape_cast %67 : vector<8xf32> to vector<8x1xf32>
    %69 = vector.broadcast %68 : vector<8x1xf32> to vector<8x8xf32>
    %70 = arith.subf %62, %69 : vector<8x8xf32>
    %71 = math.exp %70 : vector<8x8xf32>
    %cst_22 = arith.constant dense<0.000000e+00> : vector<8xf32>
    %72 = vector.multi_reduction <add>, %71, %cst_22 [1] : vector<8x8xf32> to vector<8xf32>
    %73 = vector.shape_cast %72 : vector<8xf32> to vector<8x1xf32>
    %74 = tpu.reciprocal %73 {approx = true} : vector<8x1xf32> -> vector<8x1xf32>
    %75 = vector.broadcast %74 : vector<8x1xf32> to vector<8x8xf32>
    %76 = arith.mulf %71, %75 : vector<8x8xf32>
    %cst_23 = arith.constant dense<0xFF800000> : vector<8xf32>
    %77 = vector.multi_reduction <maximumf>, %66, %cst_23 [1] : vector<8x8xf32> to vector<8xf32>
    %78 = vector.shape_cast %77 : vector<8xf32> to vector<8x1xf32>
    %79 = vector.broadcast %78 : vector<8x1xf32> to vector<8x8xf32>
    %80 = arith.subf %66, %79 : vector<8x8xf32>
    %81 = math.exp %80 : vector<8x8xf32>
    %cst_24 = arith.constant dense<0.000000e+00> : vector<8xf32>
    %82 = vector.multi_reduction <add>, %81, %cst_24 [1] : vector<8x8xf32> to vector<8xf32>
    %83 = vector.shape_cast %82 : vector<8xf32> to vector<8x1xf32>
    %84 = tpu.reciprocal %83 {approx = true} : vector<8x1xf32> -> vector<8x1xf32>
    %85 = vector.broadcast %84 : vector<8x1xf32> to vector<8x8xf32>
    %86 = arith.mulf %81, %85 : vector<8x8xf32>
    %cst_25 = arith.constant 5.000000e-01 : f32
    %87 = vector.broadcast %cst_25 : f32 to vector<8x8xf32>
    %88 = arith.mulf %87, %86 : vector<8x8xf32>
    %89 = arith.subf %76, %88 : vector<8x8xf32>
    %90 = arith.truncf %89 : vector<8x8xf32> to vector<8x8xbf16>
    %cst_26 = arith.constant dense<0.000000e+00> : vector<8x8xf32>
    %91 = tpu.matmul %90, %58, %cst_26 {dimension_numbers = #tpu.dot_dimension_numbers<[1], [0], [0], [1], [0, 0, 1, 1], [], []>} : vector<8x8xbf16>, vector<8x8xbf16>, vector<8x8xf32> -> vector<8x8xf32>
    %92 = arith.truncf %91 : vector<8x8xf32> to vector<8x8xbf16>
    %c0_27 = arith.constant 0 : index
    %c0_28 = arith.constant 0 : index
    %c8 = arith.constant 8 : index
    %93 = vector.load %arg3[%c0_27, %c0_28, %c8] : memref<1x8x32xbf16, #tpu.memory_space<vmem>>, vector<1x8x8xbf16>
    %94 = vector.shape_cast %93 : vector<1x8x8xbf16> to vector<8x8xbf16>
    %95 = vector.shape_cast %92 : vector<8x8xbf16> to vector<1x8x8xbf16>
    tpu.vector_store %arg3[%c0_27, %c0_28, %c8], %95 {strides = array<i32>} : memref<1x8x32xbf16, #tpu.memory_space<vmem>>, vector<1x8x8xbf16>,
    %96 = vector.extract_strided_slice %3 {offsets = [0, 16], sizes = [8, 8], strides = [1, 1]} : vector<8x160xbf16> to vector<8x8xbf16>
    %cst_29 = arith.constant 3.535160e-01 : bf16
    %97 = vector.broadcast %cst_29 : bf16 to vector<8x8xbf16>
    %98 = arith.mulf %96, %97 : vector<8x8xbf16>
    %99 = vector.extract_strided_slice %3 {offsets = [0, 48], sizes = [8, 8], strides = [1, 1]} : vector<8x160xbf16> to vector<8x8xbf16>
    %cst_30 = arith.constant 3.535160e-01 : bf16
    %100 = vector.broadcast %cst_30 : bf16 to vector<8x8xbf16>
    %101 = arith.mulf %99, %100 : vector<8x8xbf16>
    %102 = vector.extract_strided_slice %3 {offsets = [0, 80], sizes = [8, 8], strides = [1, 1]} : vector<8x160xbf16> to vector<8x8xbf16>
    %103 = vector.extract_strided_slice %3 {offsets = [0, 112], sizes = [8, 8], strides = [1, 1]} : vector<8x160xbf16> to vector<8x8xbf16>
    %104 = vector.extract_strided_slice %3 {offsets = [0, 144], sizes = [8, 8], strides = [1, 1]} : vector<8x160xbf16> to vector<8x8xbf16>
    %105 = tpu.transpose %102, [1, 0] : vector<8x8xbf16> -> vector<8x8xbf16>
    %cst_31 = arith.constant dense<0.000000e+00> : vector<8x8xf32>
    %106 = tpu.matmul %98, %105, %cst_31 {dimension_numbers = #tpu.dot_dimension_numbers<[1], [0], [0], [1], [0, 0, 1, 1], [], []>} : vector<8x8xbf16>, vector<8x8xbf16>, vector<8x8xf32> -> vector<8x8xf32>
    %107 = vector.broadcast %1 : vector<1x8xf32> to vector<8x8xf32>
    %108 = arith.addf %106, %107 : vector<8x8xf32>
    %109 = tpu.transpose %103, [1, 0] : vector<8x8xbf16> -> vector<8x8xbf16>
    %cst_32 = arith.constant dense<0.000000e+00> : vector<8x8xf32>
    %110 = tpu.matmul %101, %109, %cst_32 {dimension_numbers = #tpu.dot_dimension_numbers<[1], [0], [0], [1], [0, 0, 1, 1], [], []>} : vector<8x8xbf16>, vector<8x8xbf16>, vector<8x8xf32> -> vector<8x8xf32>
    %111 = vector.broadcast %1 : vector<1x8xf32> to vector<8x8xf32>
    %112 = arith.addf %110, %111 : vector<8x8xf32>
    %cst_33 = arith.constant dense<0xFF800000> : vector<8xf32>
    %113 = vector.multi_reduction <maximumf>, %108, %cst_33 [1] : vector<8x8xf32> to vector<8xf32>
    %114 = vector.shape_cast %113 : vector<8xf32> to vector<8x1xf32>
    %115 = vector.broadcast %114 : vector<8x1xf32> to vector<8x8xf32>
    %116 = arith.subf %108, %115 : vector<8x8xf32>
    %117 = math.exp %116 : vector<8x8xf32>
    %cst_34 = arith.constant dense<0.000000e+00> : vector<8xf32>
    %118 = vector.multi_reduction <add>, %117, %cst_34 [1] : vector<8x8xf32> to vector<8xf32>
    %119 = vector.shape_cast %118 : vector<8xf32> to vector<8x1xf32>
    %120 = tpu.reciprocal %119 {approx = true} : vector<8x1xf32> -> vector<8x1xf32>
    %121 = vector.broadcast %120 : vector<8x1xf32> to vector<8x8xf32>
    %122 = arith.mulf %117, %121 : vector<8x8xf32>
    %cst_35 = arith.constant dense<0xFF800000> : vector<8xf32>
    %123 = vector.multi_reduction <maximumf>, %112, %cst_35 [1] : vector<8x8xf32> to vector<8xf32>
    %124 = vector.shape_cast %123 : vector<8xf32> to vector<8x1xf32>
    %125 = vector.broadcast %124 : vector<8x1xf32> to vector<8x8xf32>
    %126 = arith.subf %112, %125 : vector<8x8xf32>
    %127 = math.exp %126 : vector<8x8xf32>
    %cst_36 = arith.constant dense<0.000000e+00> : vector<8xf32>
    %128 = vector.multi_reduction <add>, %127, %cst_36 [1] : vector<8x8xf32> to vector<8xf32>
    %129 = vector.shape_cast %128 : vector<8xf32> to vector<8x1xf32>
    %130 = tpu.reciprocal %129 {approx = true} : vector<8x1xf32> -> vector<8x1xf32>
    %131 = vector.broadcast %130 : vector<8x1xf32> to vector<8x8xf32>
    %132 = arith.mulf %127, %131 : vector<8x8xf32>
    %cst_37 = arith.constant 5.000000e-01 : f32
    %133 = vector.broadcast %cst_37 : f32 to vector<8x8xf32>
    %134 = arith.mulf %133, %132 : vector<8x8xf32>
    %135 = arith.subf %122, %134 : vector<8x8xf32>
    %136 = arith.truncf %135 : vector<8x8xf32> to vector<8x8xbf16>
    %cst_38 = arith.constant dense<0.000000e+00> : vector<8x8xf32>
    %137 = tpu.matmul %136, %104, %cst_38 {dimension_numbers = #tpu.dot_dimension_numbers<[1], [0], [0], [1], [0, 0, 1, 1], [], []>} : vector<8x8xbf16>, vector<8x8xbf16>, vector<8x8xf32> -> vector<8x8xf32>
    %138 = arith.truncf %137 : vector<8x8xf32> to vector<8x8xbf16>
    %c0_39 = arith.constant 0 : index
    %c0_40 = arith.constant 0 : index
    %c16 = arith.constant 16 : index
    %139 = vector.load %arg3[%c0_39, %c0_40, %c16] : memref<1x8x32xbf16, #tpu.memory_space<vmem>>, vector<1x8x8xbf16>
    %140 = vector.shape_cast %139 : vector<1x8x8xbf16> to vector<8x8xbf16>
    %141 = vector.shape_cast %138 : vector<8x8xbf16> to vector<1x8x8xbf16>
    tpu.vector_store %arg3[%c0_39, %c0_40, %c16], %141 {strides = array<i32>} : memref<1x8x32xbf16, #tpu.memory_space<vmem>>, vector<1x8x8xbf16>,
    %142 = vector.extract_strided_slice %3 {offsets = [0, 24], sizes = [8, 8], strides = [1, 1]} : vector<8x160xbf16> to vector<8x8xbf16>
    %cst_41 = arith.constant 3.535160e-01 : bf16
    %143 = vector.broadcast %cst_41 : bf16 to vector<8x8xbf16>
    %144 = arith.mulf %142, %143 : vector<8x8xbf16>
    %145 = vector.extract_strided_slice %3 {offsets = [0, 56], sizes = [8, 8], strides = [1, 1]} : vector<8x160xbf16> to vector<8x8xbf16>
    %cst_42 = arith.constant 3.535160e-01 : bf16
    %146 = vector.broadcast %cst_42 : bf16 to vector<8x8xbf16>
    %147 = arith.mulf %145, %146 : vector<8x8xbf16>
    %148 = vector.extract_strided_slice %3 {offsets = [0, 88], sizes = [8, 8], strides = [1, 1]} : vector<8x160xbf16> to vector<8x8xbf16>
    %149 = vector.extract_strided_slice %3 {offsets = [0, 120], sizes = [8, 8], strides = [1, 1]} : vector<8x160xbf16> to vector<8x8xbf16>
    %150 = vector.extract_strided_slice %3 {offsets = [0, 152], sizes = [8, 8], strides = [1, 1]} : vector<8x160xbf16> to vector<8x8xbf16>
    %151 = tpu.transpose %148, [1, 0] : vector<8x8xbf16> -> vector<8x8xbf16>
    %cst_43 = arith.constant dense<0.000000e+00> : vector<8x8xf32>
    %152 = tpu.matmul %144, %151, %cst_43 {dimension_numbers = #tpu.dot_dimension_numbers<[1], [0], [0], [1], [0, 0, 1, 1], [], []>} : vector<8x8xbf16>, vector<8x8xbf16>, vector<8x8xf32> -> vector<8x8xf32>
    %153 = vector.broadcast %1 : vector<1x8xf32> to vector<8x8xf32>
    %154 = arith.addf %152, %153 : vector<8x8xf32>
    %155 = tpu.transpose %149, [1, 0] : vector<8x8xbf16> -> vector<8x8xbf16>
    %cst_44 = arith.constant dense<0.000000e+00> : vector<8x8xf32>
    %156 = tpu.matmul %147, %155, %cst_44 {dimension_numbers = #tpu.dot_dimension_numbers<[1], [0], [0], [1], [0, 0, 1, 1], [], []>} : vector<8x8xbf16>, vector<8x8xbf16>, vector<8x8xf32> -> vector<8x8xf32>
    %157 = vector.broadcast %1 : vector<1x8xf32> to vector<8x8xf32>
    %158 = arith.addf %156, %157 : vector<8x8xf32>
    %cst_45 = arith.constant dense<0xFF800000> : vector<8xf32>
    %159 = vector.multi_reduction <maximumf>, %154, %cst_45 [1] : vector<8x8xf32> to vector<8xf32>
    %160 = vector.shape_cast %159 : vector<8xf32> to vector<8x1xf32>
    %161 = vector.broadcast %160 : vector<8x1xf32> to vector<8x8xf32>
    %162 = arith.subf %154, %161 : vector<8x8xf32>
    %163 = math.exp %162 : vector<8x8xf32>
    %cst_46 = arith.constant dense<0.000000e+00> : vector<8xf32>
    %164 = vector.multi_reduction <add>, %163, %cst_46 [1] : vector<8x8xf32> to vector<8xf32>
    %165 = vector.shape_cast %164 : vector<8xf32> to vector<8x1xf32>
    %166 = tpu.reciprocal %165 {approx = true} : vector<8x1xf32> -> vector<8x1xf32>
    %167 = vector.broadcast %166 : vector<8x1xf32> to vector<8x8xf32>
    %168 = arith.mulf %163, %167 : vector<8x8xf32>
    %cst_47 = arith.constant dense<0xFF800000> : vector<8xf32>
    %169 = vector.multi_reduction <maximumf>, %158, %cst_47 [1] : vector<8x8xf32> to vector<8xf32>
    %170 = vector.shape_cast %169 : vector<8xf32> to vector<8x1xf32>
    %171 = vector.broadcast %170 : vector<8x1xf32> to vector<8x8xf32>
    %172 = arith.subf %158, %171 : vector<8x8xf32>
    %173 = math.exp %172 : vector<8x8xf32>
    %cst_48 = arith.constant dense<0.000000e+00> : vector<8xf32>
    %174 = vector.multi_reduction <add>, %173, %cst_48 [1] : vector<8x8xf32> to vector<8xf32>
    %175 = vector.shape_cast %174 : vector<8xf32> to vector<8x1xf32>
    %176 = tpu.reciprocal %175 {approx = true} : vector<8x1xf32> -> vector<8x1xf32>
    %177 = vector.broadcast %176 : vector<8x1xf32> to vector<8x8xf32>
    %178 = arith.mulf %173, %177 : vector<8x8xf32>
    %cst_49 = arith.constant 5.000000e-01 : f32
    %179 = vector.broadcast %cst_49 : f32 to vector<8x8xf32>
    %180 = arith.mulf %179, %178 : vector<8x8xf32>
    %181 = arith.subf %168, %180 : vector<8x8xf32>
    %182 = arith.truncf %181 : vector<8x8xf32> to vector<8x8xbf16>
    %cst_50 = arith.constant dense<0.000000e+00> : vector<8x8xf32>
    %183 = tpu.matmul %182, %150, %cst_50 {dimension_numbers = #tpu.dot_dimension_numbers<[1], [0], [0], [1], [0, 0, 1, 1], [], []>} : vector<8x8xbf16>, vector<8x8xbf16>, vector<8x8xf32> -> vector<8x8xf32>
    %184 = arith.truncf %183 : vector<8x8xf32> to vector<8x8xbf16>
    %c0_51 = arith.constant 0 : index
    %c0_52 = arith.constant 0 : index
    %c24 = arith.constant 24 : index
    %185 = vector.load %arg3[%c0_51, %c0_52, %c24] : memref<1x8x32xbf16, #tpu.memory_space<vmem>>, vector<1x8x8xbf16>
    %186 = vector.shape_cast %185 : vector<1x8x8xbf16> to vector<8x8xbf16>
    %187 = vector.shape_cast %184 : vector<8x8xbf16> to vector<1x8x8xbf16>
    tpu.vector_store %arg3[%c0_51, %c0_52, %c24], %187 {strides = array<i32>} : memref<1x8x32xbf16, #tpu.memory_space<vmem>>, vector<1x8x8xbf16>,
    return
  }
  func.func @transform_0(%arg0: i32) -> (i32, i32, i32) {
    %c0_i32 = arith.constant 0 : i32
    %c0_i32_0 = arith.constant 0 : i32
    %c0_i32_1 = arith.constant 0 : i32
    return %arg0, %c0_i32, %c0_i32_0 : i32, i32, i32
  }
  func.func @transform_1(%arg0: i32) -> (i32, i32, i32) {
    %c0_i32 = arith.constant 0 : i32
    %c0_i32_0 = arith.constant 0 : i32
    %c0_i32_1 = arith.constant 0 : i32
    return %arg0, %c0_i32, %c0_i32_0 : i32, i32, i32
  }
  func.func @transform_2(%arg0: i32) -> (i32, i32, i32) {
    %c0_i32 = arith.constant 0 : i32
    %c0_i32_0 = arith.constant 0 : i32
    %c0_i32_1 = arith.constant 0 : i32
    return %arg0, %c0_i32, %c0_i32_0 : i32, i32, i32
  }
}

module attributes {stable_mosaic.version = 11 : i64} {
  func.func @_matmul_kernel(%arg0: i32, %arg1: i32, %arg2: i32, %arg3: memref<16x32xf32, #tpu.memory_space<vmem>>, %arg4: memref<32x160xbf16, #tpu.memory_space<vmem>>, %arg5: memref<1x160xf32, #tpu.memory_space<vmem>>, %arg6: memref<16x160xbf16, #tpu.memory_space<vmem>>, %arg7: memref<16x160xf32, #tpu.memory_space<vmem>>) attributes {dimension_semantics = [#tpu.dimension_semantics<parallel>, #tpu.dimension_semantics<parallel>, #tpu.dimension_semantics<arbitrary>], iteration_bounds = array<i64: 1, 1, 1>, scalar_prefetch = 0 : i64, scratch_operands = 1 : i64, tpu.core_type = #tpu.core_type<tc>, window_params = [{transform_indices = @transform_0, window_bounds = array<i64: 16, 32>}, {transform_indices = @transform_1, window_bounds = array<i64: 32, 160>}, {transform_indices = @transform_2, window_bounds = array<i64: 1, 160>}, {transform_indices = @transform_3, window_bounds = array<i64: 16, 160>}]} {
    %c0_i32 = arith.constant 0 : i32
    %0 = arith.cmpi eq, %arg2, %c0_i32 : i32
    %1 = arith.extui %0 : i1 to i32
    %c0_i32_0 = arith.constant 0 : i32
    %2 = arith.cmpi ne, %1, %c0_i32_0 : i32
    scf.if %2 {
      %cst_10 = arith.constant 0.000000e+00 : f32
      %13 = vector.broadcast %cst_10 : f32 to vector<16x160xf32>
      %c0_11 = arith.constant 0 : index
      %c0_12 = arith.constant 0 : index
      %14 = vector.load %arg7[%c0_11, %c0_12] : memref<16x160xf32, #tpu.memory_space<vmem>>, vector<16x160xf32>
      tpu.vector_store %arg7[%c0_11, %c0_12], %13 {strides = array<i32>} : memref<16x160xf32, #tpu.memory_space<vmem>>, vector<16x160xf32>,
    } else {
    }
    %c0 = arith.constant 0 : index
    %c0_1 = arith.constant 0 : index
    %3 = vector.load %arg7[%c0, %c0_1] : memref<16x160xf32, #tpu.memory_space<vmem>>, vector<16x160xf32>
    %c0_2 = arith.constant 0 : index
    %c0_3 = arith.constant 0 : index
    %4 = vector.load %arg3[%c0_2, %c0_3] : memref<16x32xf32, #tpu.memory_space<vmem>>, vector<16x32xf32>
    %5 = arith.truncf %4 : vector<16x32xf32> to vector<16x32xbf16>
    %c0_4 = arith.constant 0 : index
    %c0_5 = arith.constant 0 : index
    %6 = vector.load %arg4[%c0_4, %c0_5] : memref<32x160xbf16, #tpu.memory_space<vmem>>, vector<32x160xbf16>
    %cst = arith.constant dense<0.000000e+00> : vector<16x160xf32>
    %7 = tpu.matmul %5, %6, %cst {dimension_numbers = #tpu.dot_dimension_numbers<[1], [0], [0], [1], [0, 0, 1, 1], [], []>} : vector<16x32xbf16>, vector<32x160xbf16>, vector<16x160xf32> -> vector<16x160xf32>
    %8 = arith.addf %3, %7 : vector<16x160xf32>
    %c0_6 = arith.constant 0 : index
    %c0_7 = arith.constant 0 : index
    %9 = vector.load %arg7[%c0_6, %c0_7] : memref<16x160xf32, #tpu.memory_space<vmem>>, vector<16x160xf32>
    tpu.vector_store %arg7[%c0_6, %c0_7], %8 {strides = array<i32>} : memref<16x160xf32, #tpu.memory_space<vmem>>, vector<16x160xf32>,
    %c0_i32_8 = arith.constant 0 : i32
    %10 = arith.cmpi eq, %arg2, %c0_i32_8 : i32
    %11 = arith.extui %10 : i1 to i32
    %c0_i32_9 = arith.constant 0 : i32
    %12 = arith.cmpi ne, %11, %c0_i32_9 : i32
    scf.if %12 {
      %c0_10 = arith.constant 0 : index
      %c0_11 = arith.constant 0 : index
      %13 = vector.load %arg7[%c0_10, %c0_11] : memref<16x160xf32, #tpu.memory_space<vmem>>, vector<16x160xf32>
      %c0_12 = arith.constant 0 : index
      %c0_13 = arith.constant 0 : index
      %14 = vector.load %arg5[%c0_12, %c0_13] : memref<1x160xf32, #tpu.memory_space<vmem>>, vector<1x160xf32>
      %15 = vector.broadcast %14 : vector<1x160xf32> to vector<16x160xf32>
      %16 = arith.addf %13, %15 : vector<16x160xf32>
      %17 = arith.truncf %16 : vector<16x160xf32> to vector<16x160xbf16>
      %c0_14 = arith.constant 0 : index
      %c0_15 = arith.constant 0 : index
      %18 = vector.load %arg6[%c0_14, %c0_15] : memref<16x160xbf16, #tpu.memory_space<vmem>>, vector<16x160xbf16>
      tpu.vector_store %arg6[%c0_14, %c0_15], %17 {strides = array<i32>} : memref<16x160xbf16, #tpu.memory_space<vmem>>, vector<16x160xbf16>,
    } else {
    }
    return
  }
  func.func @transform_0(%arg0: i32, %arg1: i32, %arg2: i32) -> (i32, i32) {
    %c0_i32 = arith.constant 0 : i32
    return %arg0, %arg2 : i32, i32
  }
  func.func @transform_1(%arg0: i32, %arg1: i32, %arg2: i32) -> (i32, i32) {
    %c0_i32 = arith.constant 0 : i32
    return %arg2, %arg1 : i32, i32
  }
  func.func @transform_2(%arg0: i32, %arg1: i32, %arg2: i32) -> (i32, i32) {
    %c0_i32 = arith.constant 0 : i32
    %c0_i32_0 = arith.constant 0 : i32
    return %c0_i32, %arg1 : i32, i32
  }
  func.func @transform_3(%arg0: i32, %arg1: i32, %arg2: i32) -> (i32, i32) {
    %c0_i32 = arith.constant 0 : i32
    return %arg0, %arg1 : i32, i32
  }
}

module attributes {stable_mosaic.version = 11 : i64} {
  func.func @_linear_res_ln_kernel(%arg0: i32, %arg1: i32, %arg2: memref<16x64xbf16, #tpu.memory_space<vmem>>, %arg3: memref<64x32xbf16, #tpu.memory_space<vmem>>, %arg4: memref<1x32xf32, #tpu.memory_space<vmem>>, %arg5: memref<16x32xf32, #tpu.memory_space<vmem>>, %arg6: memref<1x32xf32, #tpu.memory_space<vmem>>, %arg7: memref<1x32xf32, #tpu.memory_space<vmem>>, %arg8: memref<16x32xf32, #tpu.memory_space<vmem>>, %arg9: memref<16x32xf32, #tpu.memory_space<vmem>>) attributes {dimension_semantics = [#tpu.dimension_semantics<parallel>, #tpu.dimension_semantics<arbitrary>], iteration_bounds = array<i64: 1, 1>, scalar_prefetch = 0 : i64, scratch_operands = 1 : i64, tpu.core_type = #tpu.core_type<tc>, window_params = [{transform_indices = @transform_0, window_bounds = array<i64: 16, 64>}, {transform_indices = @transform_1, window_bounds = array<i64: 64, 32>}, {pipeline_mode = #tpu.pipeline_mode<synchronous>, transform_indices = @transform_2, window_bounds = array<i64: 1, 32>}, {transform_indices = @transform_3, window_bounds = array<i64: 16, 32>}, {pipeline_mode = #tpu.pipeline_mode<synchronous>, transform_indices = @transform_4, window_bounds = array<i64: 1, 32>}, {pipeline_mode = #tpu.pipeline_mode<synchronous>, transform_indices = @transform_5, window_bounds = array<i64: 1, 32>}, {transform_indices = @transform_6, window_bounds = array<i64: 16, 32>}]} {
    %c0_i32 = arith.constant 0 : i32
    %0 = arith.cmpi eq, %arg1, %c0_i32 : i32
    %1 = arith.extui %0 : i1 to i32
    %c0_i32_0 = arith.constant 0 : i32
    %2 = arith.cmpi ne, %1, %c0_i32_0 : i32
    scf.if %2 {
      %cst_10 = arith.constant 0.000000e+00 : f32
      %12 = vector.broadcast %cst_10 : f32 to vector<16x32xf32>
      %c0_11 = arith.constant 0 : index
      %c0_12 = arith.constant 0 : index
      %13 = vector.load %arg9[%c0_11, %c0_12] : memref<16x32xf32, #tpu.memory_space<vmem>>, vector<16x32xf32>
      tpu.vector_store %arg9[%c0_11, %c0_12], %12 {strides = array<i32>} : memref<16x32xf32, #tpu.memory_space<vmem>>, vector<16x32xf32>,
    } else {
    }
    %c0 = arith.constant 0 : index
    %c0_1 = arith.constant 0 : index
    %3 = vector.load %arg9[%c0, %c0_1] : memref<16x32xf32, #tpu.memory_space<vmem>>, vector<16x32xf32>
    %c0_2 = arith.constant 0 : index
    %c0_3 = arith.constant 0 : index
    %4 = vector.load %arg2[%c0_2, %c0_3] : memref<16x64xbf16, #tpu.memory_space<vmem>>, vector<16x64xbf16>
    %c0_4 = arith.constant 0 : index
    %c0_5 = arith.constant 0 : index
    %5 = vector.load %arg3[%c0_4, %c0_5] : memref<64x32xbf16, #tpu.memory_space<vmem>>, vector<64x32xbf16>
    %cst = arith.constant dense<0.000000e+00> : vector<16x32xf32>
    %6 = tpu.matmul %4, %5, %cst {dimension_numbers = #tpu.dot_dimension_numbers<[1], [0], [0], [1], [0, 0, 1, 1], [], []>} : vector<16x64xbf16>, vector<64x32xbf16>, vector<16x32xf32> -> vector<16x32xf32>
    %7 = arith.addf %3, %6 : vector<16x32xf32>
    %c0_6 = arith.constant 0 : index
    %c0_7 = arith.constant 0 : index
    %8 = vector.load %arg9[%c0_6, %c0_7] : memref<16x32xf32, #tpu.memory_space<vmem>>, vector<16x32xf32>
    tpu.vector_store %arg9[%c0_6, %c0_7], %7 {strides = array<i32>} : memref<16x32xf32, #tpu.memory_space<vmem>>, vector<16x32xf32>,
    %c0_i32_8 = arith.constant 0 : i32
    %9 = arith.cmpi eq, %arg1, %c0_i32_8 : i32
    %10 = arith.extui %9 : i1 to i32
    %c0_i32_9 = arith.constant 0 : i32
    %11 = arith.cmpi ne, %10, %c0_i32_9 : i32
    scf.if %11 {
      %c0_10 = arith.constant 0 : index
      %c0_11 = arith.constant 0 : index
      %12 = vector.load %arg9[%c0_10, %c0_11] : memref<16x32xf32, #tpu.memory_space<vmem>>, vector<16x32xf32>
      %c0_12 = arith.constant 0 : index
      %c0_13 = arith.constant 0 : index
      %13 = vector.load %arg4[%c0_12, %c0_13] : memref<1x32xf32, #tpu.memory_space<vmem>>, vector<1x32xf32>
      %14 = vector.broadcast %13 : vector<1x32xf32> to vector<16x32xf32>
      %15 = arith.addf %12, %14 : vector<16x32xf32>
      %cst_14 = arith.constant 0.000000e+00 : f32
      %16 = vector.broadcast %cst_14 : f32 to vector<16x32xf32>
      %17 = arith.maximumf %15, %16 : vector<16x32xf32>
      %c0_15 = arith.constant 0 : index
      %c0_16 = arith.constant 0 : index
      %18 = vector.load %arg5[%c0_15, %c0_16] : memref<16x32xf32, #tpu.memory_space<vmem>>, vector<16x32xf32>
      %19 = arith.addf %17, %18 : vector<16x32xf32>
      %cst_17 = arith.constant dense<0.000000e+00> : vector<16xf32>
      %20 = vector.multi_reduction <add>, %19, %cst_17 [1] : vector<16x32xf32> to vector<16xf32>
      %21 = vector.shape_cast %20 : vector<16xf32> to vector<16x1xf32>
      %cst_18 = arith.constant 3.200000e+01 : f32
      %22 = vector.broadcast %cst_18 : f32 to vector<16x1xf32>
      %23 = arith.divf %21, %22 : vector<16x1xf32>
      %24 = vector.broadcast %23 : vector<16x1xf32> to vector<16x32xf32>
      %25 = arith.subf %19, %24 : vector<16x32xf32>
      %26 = arith.mulf %25, %25 : vector<16x32xf32>
      %cst_19 = arith.constant dense<0.000000e+00> : vector<16xf32>
      %27 = vector.multi_reduction <add>, %26, %cst_19 [1] : vector<16x32xf32> to vector<16xf32>
      %28 = vector.shape_cast %27 : vector<16xf32> to vector<16x1xf32>
      %cst_20 = arith.constant 3.200000e+01 : f32
      %29 = vector.broadcast %cst_20 : f32 to vector<16x1xf32>
      %30 = arith.divf %28, %29 : vector<16x1xf32>
      %cst_21 = arith.constant 9.99999974E-6 : f32
      %31 = vector.broadcast %cst_21 : f32 to vector<16x1xf32>
      %32 = arith.addf %30, %31 : vector<16x1xf32>
      %33 = math.rsqrt %32 : vector<16x1xf32>
      %34 = vector.broadcast %33 : vector<16x1xf32> to vector<16x32xf32>
      %35 = arith.mulf %25, %34 : vector<16x32xf32>
      %c0_22 = arith.constant 0 : index
      %c0_23 = arith.constant 0 : index
      %36 = vector.load %arg6[%c0_22, %c0_23] : memref<1x32xf32, #tpu.memory_space<vmem>>, vector<1x32xf32>
      %37 = vector.broadcast %36 : vector<1x32xf32> to vector<16x32xf32>
      %38 = arith.mulf %35, %37 : vector<16x32xf32>
      %c0_24 = arith.constant 0 : index
      %c0_25 = arith.constant 0 : index
      %39 = vector.load %arg7[%c0_24, %c0_25] : memref<1x32xf32, #tpu.memory_space<vmem>>, vector<1x32xf32>
      %40 = vector.broadcast %39 : vector<1x32xf32> to vector<16x32xf32>
      %41 = arith.addf %38, %40 : vector<16x32xf32>
      %c0_26 = arith.constant 0 : index
      %c0_27 = arith.constant 0 : index
      %42 = vector.load %arg8[%c0_26, %c0_27] : memref<16x32xf32, #tpu.memory_space<vmem>>, vector<16x32xf32>
      tpu.vector_store %arg8[%c0_26, %c0_27], %41 {strides = array<i32>} : memref<16x32xf32, #tpu.memory_space<vmem>>, vector<16x32xf32>,
    } else {
    }
    return
  }
  func.func @transform_0(%arg0: i32, %arg1: i32) -> (i32, i32) {
    %c0_i32 = arith.constant 0 : i32
    return %arg0, %arg1 : i32, i32
  }
  func.func @transform_1(%arg0: i32, %arg1: i32) -> (i32, i32) {
    %c0_i32 = arith.constant 0 : i32
    %c0_i32_0 = arith.constant 0 : i32
    return %arg1, %c0_i32 : i32, i32
  }
  func.func @transform_2(%arg0: i32, %arg1: i32) -> (i32, i32) {
    %c0_i32 = arith.constant 0 : i32
    %c0_i32_0 = arith.constant 0 : i32
    %c0_i32_1 = arith.constant 0 : i32
    return %c0_i32, %c0_i32_0 : i32, i32
  }
  func.func @transform_3(%arg0: i32, %arg1: i32) -> (i32, i32) {
    %c0_i32 = arith.constant 0 : i32
    %c0_i32_0 = arith.constant 0 : i32
    return %arg0, %c0_i32 : i32, i32
  }
  func.func @transform_4(%arg0: i32, %arg1: i32) -> (i32, i32) {
    %c0_i32 = arith.constant 0 : i32
    %c0_i32_0 = arith.constant 0 : i32
    %c0_i32_1 = arith.constant 0 : i32
    return %c0_i32, %c0_i32_0 : i32, i32
  }
  func.func @transform_5(%arg0: i32, %arg1: i32) -> (i32, i32) {
    %c0_i32 = arith.constant 0 : i32
    %c0_i32_0 = arith.constant 0 : i32
    %c0_i32_1 = arith.constant 0 : i32
    return %c0_i32, %c0_i32_0 : i32, i32
  }
  func.func @transform_6(%arg0: i32, %arg1: i32) -> (i32, i32) {
    %c0_i32 = arith.constant 0 : i32
    %c0_i32_0 = arith.constant 0 : i32
    return %arg0, %c0_i32 : i32, i32
  }
}

module attributes {stable_mosaic.version = 11 : i64} {
  func.func @_linear_res_ln_kernel(%arg0: i32, %arg1: i32, %arg2: memref<16x64xbf16, #tpu.memory_space<vmem>>, %arg3: memref<64x32xbf16, #tpu.memory_space<vmem>>, %arg4: memref<1x32xf32, #tpu.memory_space<vmem>>, %arg5: memref<16x32xf32, #tpu.memory_space<vmem>>, %arg6: memref<1x32xf32, #tpu.memory_space<vmem>>, %arg7: memref<1x32xf32, #tpu.memory_space<vmem>>, %arg8: memref<16x32xf32, #tpu.memory_space<vmem>>, %arg9: memref<16x32xf32, #tpu.memory_space<vmem>>) attributes {dimension_semantics = [#tpu.dimension_semantics<parallel>, #tpu.dimension_semantics<arbitrary>], iteration_bounds = array<i64: 1, 1>, scalar_prefetch = 0 : i64, scratch_operands = 1 : i64, tpu.core_type = #tpu.core_type<tc>, window_params = [{transform_indices = @transform_0, window_bounds = array<i64: 16, 64>}, {transform_indices = @transform_1, window_bounds = array<i64: 64, 32>}, {pipeline_mode = #tpu.pipeline_mode<synchronous>, transform_indices = @transform_2, window_bounds = array<i64: 1, 32>}, {transform_indices = @transform_3, window_bounds = array<i64: 16, 32>}, {pipeline_mode = #tpu.pipeline_mode<synchronous>, transform_indices = @transform_4, window_bounds = array<i64: 1, 32>}, {pipeline_mode = #tpu.pipeline_mode<synchronous>, transform_indices = @transform_5, window_bounds = array<i64: 1, 32>}, {transform_indices = @transform_6, window_bounds = array<i64: 16, 32>}]} {
    %c0_i32 = arith.constant 0 : i32
    %0 = arith.cmpi eq, %arg1, %c0_i32 : i32
    %1 = arith.extui %0 : i1 to i32
    %c0_i32_0 = arith.constant 0 : i32
    %2 = arith.cmpi ne, %1, %c0_i32_0 : i32
    scf.if %2 {
      %cst_10 = arith.constant 0.000000e+00 : f32
      %12 = vector.broadcast %cst_10 : f32 to vector<16x32xf32>
      %c0_11 = arith.constant 0 : index
      %c0_12 = arith.constant 0 : index
      %13 = vector.load %arg9[%c0_11, %c0_12] : memref<16x32xf32, #tpu.memory_space<vmem>>, vector<16x32xf32>
      tpu.vector_store %arg9[%c0_11, %c0_12], %12 {strides = array<i32>} : memref<16x32xf32, #tpu.memory_space<vmem>>, vector<16x32xf32>,
    } else {
    }
    %c0 = arith.constant 0 : index
    %c0_1 = arith.constant 0 : index
    %3 = vector.load %arg9[%c0, %c0_1] : memref<16x32xf32, #tpu.memory_space<vmem>>, vector<16x32xf32>
    %c0_2 = arith.constant 0 : index
    %c0_3 = arith.constant 0 : index
    %4 = vector.load %arg2[%c0_2, %c0_3] : memref<16x64xbf16, #tpu.memory_space<vmem>>, vector<16x64xbf16>
    %c0_4 = arith.constant 0 : index
    %c0_5 = arith.constant 0 : index
    %5 = vector.load %arg3[%c0_4, %c0_5] : memref<64x32xbf16, #tpu.memory_space<vmem>>, vector<64x32xbf16>
    %cst = arith.constant dense<0.000000e+00> : vector<16x32xf32>
    %6 = tpu.matmul %4, %5, %cst {dimension_numbers = #tpu.dot_dimension_numbers<[1], [0], [0], [1], [0, 0, 1, 1], [], []>} : vector<16x64xbf16>, vector<64x32xbf16>, vector<16x32xf32> -> vector<16x32xf32>
    %7 = arith.addf %3, %6 : vector<16x32xf32>
    %c0_6 = arith.constant 0 : index
    %c0_7 = arith.constant 0 : index
    %8 = vector.load %arg9[%c0_6, %c0_7] : memref<16x32xf32, #tpu.memory_space<vmem>>, vector<16x32xf32>
    tpu.vector_store %arg9[%c0_6, %c0_7], %7 {strides = array<i32>} : memref<16x32xf32, #tpu.memory_space<vmem>>, vector<16x32xf32>,
    %c0_i32_8 = arith.constant 0 : i32
    %9 = arith.cmpi eq, %arg1, %c0_i32_8 : i32
    %10 = arith.extui %9 : i1 to i32
    %c0_i32_9 = arith.constant 0 : i32
    %11 = arith.cmpi ne, %10, %c0_i32_9 : i32
    scf.if %11 {
      %c0_10 = arith.constant 0 : index
      %c0_11 = arith.constant 0 : index
      %12 = vector.load %arg9[%c0_10, %c0_11] : memref<16x32xf32, #tpu.memory_space<vmem>>, vector<16x32xf32>
      %c0_12 = arith.constant 0 : index
      %c0_13 = arith.constant 0 : index
      %13 = vector.load %arg4[%c0_12, %c0_13] : memref<1x32xf32, #tpu.memory_space<vmem>>, vector<1x32xf32>
      %14 = vector.broadcast %13 : vector<1x32xf32> to vector<16x32xf32>
      %15 = arith.addf %12, %14 : vector<16x32xf32>
      %cst_14 = arith.constant 0.000000e+00 : f32
      %16 = vector.broadcast %cst_14 : f32 to vector<16x32xf32>
      %17 = arith.maximumf %15, %16 : vector<16x32xf32>
      %c0_15 = arith.constant 0 : index
      %c0_16 = arith.constant 0 : index
      %18 = vector.load %arg5[%c0_15, %c0_16] : memref<16x32xf32, #tpu.memory_space<vmem>>, vector<16x32xf32>
      %19 = arith.addf %17, %18 : vector<16x32xf32>
      %cst_17 = arith.constant dense<0.000000e+00> : vector<16xf32>
      %20 = vector.multi_reduction <add>, %19, %cst_17 [1] : vector<16x32xf32> to vector<16xf32>
      %21 = vector.shape_cast %20 : vector<16xf32> to vector<16x1xf32>
      %cst_18 = arith.constant 3.200000e+01 : f32
      %22 = vector.broadcast %cst_18 : f32 to vector<16x1xf32>
      %23 = arith.divf %21, %22 : vector<16x1xf32>
      %24 = vector.broadcast %23 : vector<16x1xf32> to vector<16x32xf32>
      %25 = arith.subf %19, %24 : vector<16x32xf32>
      %26 = arith.mulf %25, %25 : vector<16x32xf32>
      %cst_19 = arith.constant dense<0.000000e+00> : vector<16xf32>
      %27 = vector.multi_reduction <add>, %26, %cst_19 [1] : vector<16x32xf32> to vector<16xf32>
      %28 = vector.shape_cast %27 : vector<16xf32> to vector<16x1xf32>
      %cst_20 = arith.constant 3.200000e+01 : f32
      %29 = vector.broadcast %cst_20 : f32 to vector<16x1xf32>
      %30 = arith.divf %28, %29 : vector<16x1xf32>
      %cst_21 = arith.constant 9.99999974E-6 : f32
      %31 = vector.broadcast %cst_21 : f32 to vector<16x1xf32>
      %32 = arith.addf %30, %31 : vector<16x1xf32>
      %33 = math.rsqrt %32 : vector<16x1xf32>
      %34 = vector.broadcast %33 : vector<16x1xf32> to vector<16x32xf32>
      %35 = arith.mulf %25, %34 : vector<16x32xf32>
      %c0_22 = arith.constant 0 : index
      %c0_23 = arith.constant 0 : index
      %36 = vector.load %arg6[%c0_22, %c0_23] : memref<1x32xf32, #tpu.memory_space<vmem>>, vector<1x32xf32>
      %37 = vector.broadcast %36 : vector<1x32xf32> to vector<16x32xf32>
      %38 = arith.mulf %35, %37 : vector<16x32xf32>
      %c0_24 = arith.constant 0 : index
      %c0_25 = arith.constant 0 : index
      %39 = vector.load %arg7[%c0_24, %c0_25] : memref<1x32xf32, #tpu.memory_space<vmem>>, vector<1x32xf32>
      %40 = vector.broadcast %39 : vector<1x32xf32> to vector<16x32xf32>
      %41 = arith.addf %38, %40 : vector<16x32xf32>
      %c0_26 = arith.constant 0 : index
      %c0_27 = arith.constant 0 : index
      %42 = vector.load %arg8[%c0_26, %c0_27] : memref<16x32xf32, #tpu.memory_space<vmem>>, vector<16x32xf32>
      tpu.vector_store %arg8[%c0_26, %c0_27], %41 {strides = array<i32>} : memref<16x32xf32, #tpu.memory_space<vmem>>, vector<16x32xf32>,
    } else {
    }
    return
  }
  func.func @transform_0(%arg0: i32, %arg1: i32) -> (i32, i32) {
    %c0_i32 = arith.constant 0 : i32
    return %arg0, %arg1 : i32, i32
  }
  func.func @transform_1(%arg0: i32, %arg1: i32) -> (i32, i32) {
    %c0_i32 = arith.constant 0 : i32
    %c0_i32_0 = arith.constant 0 : i32
    return %arg1, %c0_i32 : i32, i32
  }
  func.func @transform_2(%arg0: i32, %arg1: i32) -> (i32, i32) {
    %c0_i32 = arith.constant 0 : i32
    %c0_i32_0 = arith.constant 0 : i32
    %c0_i32_1 = arith.constant 0 : i32
    return %c0_i32, %c0_i32_0 : i32, i32
  }
  func.func @transform_3(%arg0: i32, %arg1: i32) -> (i32, i32) {
    %c0_i32 = arith.constant 0 : i32
    %c0_i32_0 = arith.constant 0 : i32
    return %arg0, %c0_i32 : i32, i32
  }
  func.func @transform_4(%arg0: i32, %arg1: i32) -> (i32, i32) {
    %c0_i32 = arith.constant 0 : i32
    %c0_i32_0 = arith.constant 0 : i32
    %c0_i32_1 = arith.constant 0 : i32
    return %c0_i32, %c0_i32_0 : i32, i32
  }
  func.func @transform_5(%arg0: i32, %arg1: i32) -> (i32, i32) {
    %c0_i32 = arith.constant 0 : i32
    %c0_i32_0 = arith.constant 0 : i32
    %c0_i32_1 = arith.constant 0 : i32
    return %c0_i32, %c0_i32_0 : i32, i32
  }
  func.func @transform_6(%arg0: i32, %arg1: i32) -> (i32, i32) {
    %c0_i32 = arith.constant 0 : i32
    %c0_i32_0 = arith.constant 0 : i32
    return %arg0, %c0_i32 : i32, i32
  }
}

</mosaic_0001>

<llo_original>
// kernel: encoder_forward.12
$region0: #{encoder_forward.12}
  #allocation0 [shape = 'u32[]', space=smem, size = 0x4, offset = 0x4, fixed_abs, tag = 'smem constant byte address 0x4 - core index']
  #allocation1 [shape = 'u32[72,128]{1,0:T(1,128)}', space=vmem, size = 0x9000, scoped, tag = 'internal scratch']
  #allocation2 [shape = 'f32[16,32]{1,0:T(8,128)}', space=vmem, size = 0x2000, scoped, tag = 'scratch operand']
  %s0 = inlined_call_operand.vmem [shape: bf16[16,32], index: 0, kind: input, shape index: {}]
  %s1 = inlined_call_operand.vmem [shape: bf16[32,32], index: 1, kind: input, shape index: {}]
  %s2 = inlined_call_operand.vmem [shape: f32[1,32], index: 2, kind: input, shape index: {}]
  %s3 = inlined_call_operand.vmem [shape: f32[16,32], index: 3, kind: input, shape index: {}]
  %s4 = inlined_call_operand.vmem [shape: f32[1,32], index: 4, kind: input, shape index: {}]
  %s5 = inlined_call_operand.vmem [shape: f32[1,32], index: 5, kind: input, shape index: {}]
  %s6 = inlined_call_operand.vmem [shape: f32[16,32], index: 6, kind: output, shape index: {}]
  %s7 = sld [smem:[#allocation0]]
  $region42: #{encoder_forward.12} parent=0
    _
  %s9 = ssub.s32 1, %s7
  %s10 = scalar_select 0, %s9, %s7
  // Predicated region
  $region2: #{encoder_forward.12} parent=0 // pred_check
    _
  $region3: #{encoder_forward.12} parent=0 // pred_check_branch
    %12 = sbr.rel (0) target = $region5
  $region4: #{encoder_forward.12} parent=0 // pred_region
    _
  $region5: #{encoder_forward.12} parent=0 // pred_fallthru
    _
  // Predicated region
  $region6: #{encoder_forward.12} parent=0 // pred_check
    _
  $region7: #{encoder_forward.12} parent=0 // pred_check_branch
    %14 = sbr.rel (0) target = $region9
  $region8: #{encoder_forward.12} parent=0 // pred_region
    _
  $region9: #{encoder_forward.12} parent=0 // pred_fallthru
    _
  // Predicated region
  $region10: #{encoder_forward.12} parent=0 // pred_check
    _
  $region11: #{encoder_forward.12} parent=0 // pred_check_branch
    %16 = sbr.rel (0) target = $region13
  $region12: #{encoder_forward.12} parent=0 // pred_region
    _
  $region13: #{encoder_forward.12} parent=0 // pred_fallthru
    _
  // Predicated region
  $region14: #{encoder_forward.12} parent=0 // pred_check
    _
  $region15: #{encoder_forward.12} parent=0 // pred_check_branch
    %18 = sbr.rel (0) target = $region17
  $region16: #{encoder_forward.12} parent=0 // pred_region
    _
  $region17: #{encoder_forward.12} parent=0 // pred_fallthru
    _
  // Predicated region
  $region18: #{encoder_forward.12} parent=0 // pred_check
    _
  $region19: #{encoder_forward.12} parent=0 // pred_check_branch
    %20 = sbr.rel (0) target = $region21
  $region20: #{encoder_forward.12} parent=0 // pred_region
    _
  $region21: #{encoder_forward.12} parent=0 // pred_fallthru
    _
  // Predicated region
  $region22: #{encoder_forward.12} parent=0 // pred_check
    _
  $region23: #{encoder_forward.12} parent=0 // pred_check_branch
    %22 = sbr.rel (0) target = $region25
  $region24: #{encoder_forward.12} parent=0 // pred_region
    _
  $region25: #{encoder_forward.12} parent=0 // pred_fallthru
    _
  %p24 = scmp.eq.s32.totalorder 0, 0
  // Predicated region
  $region26: #{encoder_forward.12} parent=0 // pred_check
    %p25 = pneg %p24
  $region27: #{encoder_forward.12} parent=0 // pred_check_branch
    %27 = sbr.rel (%p25) target = $region29
  $region28: #{encoder_forward.12} parent=0 // pred_region
    %vm28 = vcmask 261120
    %29 = vst.msk [vmem:[#allocation2] sm:$0xff] %vm28, 0.0
    %30 = vst.msk [vmem:[#allocation2 + $0x8] sm:$0xff] %vm28, 0.0
  $region29: #{encoder_forward.12} parent=0 // pred_fallthru
    _
  %v31 = vld [vmem:[#allocation2] sm:$0xff]
  %v32 = vld [vmem:[#allocation2 + $0x8] sm:$0xff]
  %v33 = vld [vmem:[%s0] sm:$0xf]
  %v34 = vld [vmem:[%s0 + $0x4] sm:$0xf]
  %v35 = vld [vmem:[%s1] sm:$0xf]
  %v36 = vld [vmem:[%s1 + $0x4] sm:$0xf]
  %v37 = vld [vmem:[%s1 + $0x8] sm:$0xf]
  %v38 = vld [vmem:[%s1 + $0xc] sm:$0xf]
  %v41 = vunpack.c.l.b16 %v33
  %v42 = vunpack.c.l.b16 %v34
  %v43 = vpack.c.b16 %v42, %v41
  %v48 = vunpack.c.l.b16 %v35
  %v49 = vunpack.c.l.b16 %v36
  %v50 = vunpack.c.l.b16 %v37
  %v51 = vunpack.c.l.b16 %v38
  %v52 = vpack.c.b16 %v49, %v48
  %v53 = vpack.c.b16 %v51, %v50
  %vm56 = vcmask 261120
  %v58 = vsel %vm56, %v43, 0
  %60 = vmatpush.bf16.msra.mxu0 0
  %61 = vmatpush.bf16.msra.mxu0 0
  %62 = vmatpush.bf16.msra.mxu0 0
  %63 = vmatpush.bf16.msra.mxu0 0
  %64 = vmatpush.bf16.msra.mxu0 0
  %65 = vmatpush.bf16.msra.mxu0 0
  %66 = vmatpush.bf16.msra.mxu0 %v53
  %67 = vmatpush.bf16.msra.mxu0 %v52
  %68 = vmatmul.bf16.gmra.mxu0 %v58
  %v69 = vpop.f32.mrf.mxu0
  %v70 = vadd.f32 0.0, %v69
  %v71 = vpop.f32.mrf.mxu0
  %v72 = vadd.f32 0.0, %v71
  %73 = vdwg.mxu0
  %v74 = vadd.f32 %v31, %v70
  %v75 = vadd.f32 %v32, %v72
  %76 = vst.msk [vmem:[#allocation2] sm:$0xff] %vm56, %v74
  %77 = vst.msk [vmem:[#allocation2 + $0x8] sm:$0xff] %vm56, %v75
  // Predicated region
  $region30: #{encoder_forward.12} parent=0 // pred_check
    %p78 = pneg %p24
  $region31: #{encoder_forward.12} parent=0 // pred_check_branch
    %80 = sbr.rel (%p78) target = $region33
  $region32: #{encoder_forward.12} parent=0 // pred_region
    %v81 = vld [vmem:[#allocation2] sm:$0xff]
    %v82 = vld [vmem:[#allocation2 + $0x8] sm:$0xff]
    %v83 = vld [vmem:[%s2] sm:$0x1]
    %v85 = vperm.slane %v83, 0
    %v87 = vadd.f32 %v81, %v85
    %v88 = vadd.f32 %v82, %v85
    %v89 = vld [vmem:[%s3] sm:$0xff]
    %v90 = vld [vmem:[%s3 + $0x8] sm:$0xff]
    %v91 = vadd.f32 %v87, %v89
    %v92 = vadd.f32 %v88, %v90
    %v93 = vsel %vm56, %v91, 0.0
    %94 = vadd.xlane.f32.xlu0 %v93
    %v95 = vpop.xlane.xlu0 %94
    %v96 = vsel %vm56, %v92, 0.0
    %97 = vadd.xlane.f32.xlu0 %v96
    %v98 = vpop.xlane.xlu0 %97
    %v99 = vrcp.pop 32.0
    %v100 = vmul.f32 32.0, %v99
    %v101 = vsub.f32 1.0, %v100
    %v102 = vmul.f32 %v99, %v101
    %v103 = vadd.f32 %v99, %v102
    %vm104 = vweird.f32 %v99
    %v105 = vsel %vm104, %v99, %v103
    %v106 = vmul.f32 %v95, %v105
    %v107 = vmul.f32 %v98, %v105
    %v108 = vsub.f32 %v91, %v106
    %v109 = vsub.f32 %v92, %v107
    %v110 = vmul.f32 %v108, %v108
    %v111 = vmul.f32 %v109, %v109
    %v112 = vsel %vm56, %v110, 0.0
    %113 = vadd.xlane.f32.xlu0 %v112
    %v114 = vpop.xlane.xlu0 %113
    %v115 = vsel %vm56, %v111, 0.0
    %116 = vadd.xlane.f32.xlu0 %v115
    %v117 = vpop.xlane.xlu0 %116
    %v118 = vmul.f32 %v114, %v105
    %v119 = vmul.f32 %v117, %v105
    %v120 = vadd.f32 %v118, 1e-05
    %v121 = vadd.f32 %v119, 1e-05
    %v122 = vrsqrt.pop %v120
    %v123 = vmul.f32 %v122, %v120
    %v124 = vmul.f32 %v123, %v122
    %v125 = vmul.f32 0.5, %v124
    %v126 = vsub.f32 1.5, %v125
    %v127 = vmul.f32 %v122, %v126
    %vm128 = vweird.f32 %v120
    %vm129 = vweird.f32 %v122
    %vm130 = vmor %vm128, %vm129
    %v131 = vsel %vm130, %v122, %v127
    %v132 = vrsqrt.pop %v121
    %v133 = vmul.f32 %v132, %v121
    %v134 = vmul.f32 %v133, %v132
    %v135 = vmul.f32 0.5, %v134
    %v136 = vsub.f32 1.5, %v135
    %v137 = vmul.f32 %v132, %v136
    %vm138 = vweird.f32 %v121
    %vm139 = vweird.f32 %v132
    %vm140 = vmor %vm138, %vm139
    %v141 = vsel %vm140, %v132, %v137
    %v142 = vmul.f32 %v108, %v131
    %v143 = vmul.f32 %v109, %v141
    %v144 = vld [vmem:[%s4] sm:$0x1]
    %v146 = vperm.slane %v144, 0
    %v148 = vmul.f32 %v142, %v146
    %v149 = vmul.f32 %v143, %v146
    %v150 = vld [vmem:[%s5] sm:$0x1]
    %v152 = vperm.slane %v150, 0
    %v154 = vadd.f32 %v148, %v152
    %v155 = vadd.f32 %v149, %v152
    %156 = vst.msk [vmem:[%s6] sm:$0xff] %vm56, %v154
    %157 = vst.msk [vmem:[%s6 + $0x8] sm:$0xff] %vm56, %v155
  $region33: #{encoder_forward.12} parent=0 // pred_fallthru
    _
  // Predicated region
  $region34: #{encoder_forward.12} parent=0 // pred_check
    _
  $region35: #{encoder_forward.12} parent=0 // pred_check_branch
    %159 = sbr.rel (0) target = $region37
  $region36: #{encoder_forward.12} parent=0 // pred_region
    _
  $region37: #{encoder_forward.12} parent=0 // pred_fallthru
    _
  // Predicated region
  $region38: #{encoder_forward.12} parent=0 // pred_check
    _
  $region39: #{encoder_forward.12} parent=0 // pred_check_branch
    %161 = sbr.rel (0) target = $region41
  $region40: #{encoder_forward.12} parent=0 // pred_region
    _
  $region41: #{encoder_forward.12} parent=0 // pred_fallthru
    _

// kernel: encoder_forward.13
$region0: #{encoder_forward.13}
  #allocation0 [shape = 'u32[]', space=smem, size = 0x4, offset = 0x4, fixed_abs, tag = 'smem constant byte address 0x4 - core index']
  #allocation1 [shape = 'u32[72,128]{1,0:T(1,128)}', space=vmem, size = 0x9000, scoped, tag = 'internal scratch']
  #allocation2 [shape = 'f32[16,64]{1,0:T(8,128)}', space=vmem, size = 0x2000, scoped, tag = 'scratch operand']
  %s0 = inlined_call_operand.vmem [shape: f32[16,32], index: 0, kind: input, shape index: {}]
  %s1 = inlined_call_operand.vmem [shape: bf16[32,64], index: 1, kind: input, shape index: {}]
  %s2 = inlined_call_operand.vmem [shape: f32[1,64], index: 2, kind: input, shape index: {}]
  %s3 = inlined_call_operand.vmem [shape: bf16[16,64], index: 3, kind: output, shape index: {}]
  %s4 = sld [smem:[#allocation0]]
  $region30: #{encoder_forward.13} parent=0
    _
  %s6 = ssub.s32 1, %s4
  %s7 = scalar_select 0, %s6, %s4
  // Predicated region
  $region2: #{encoder_forward.13} parent=0 // pred_check
    _
  $region3: #{encoder_forward.13} parent=0 // pred_check_branch
    %9 = sbr.rel (0) target = $region5
  $region4: #{encoder_forward.13} parent=0 // pred_region
    _
  $region5: #{encoder_forward.13} parent=0 // pred_fallthru
    _
  // Predicated region
  $region6: #{encoder_forward.13} parent=0 // pred_check
    _
  $region7: #{encoder_forward.13} parent=0 // pred_check_branch
    %11 = sbr.rel (0) target = $region9
  $region8: #{encoder_forward.13} parent=0 // pred_region
    _
  $region9: #{encoder_forward.13} parent=0 // pred_fallthru
    _
  // Predicated region
  $region10: #{encoder_forward.13} parent=0 // pred_check
    _
  $region11: #{encoder_forward.13} parent=0 // pred_check_branch
    %13 = sbr.rel (0) target = $region13
  $region12: #{encoder_forward.13} parent=0 // pred_region
    _
  $region13: #{encoder_forward.13} parent=0 // pred_fallthru
    _
  %p15 = scmp.eq.s32.totalorder 0, 0
  // Predicated region
  $region14: #{encoder_forward.13} parent=0 // pred_check
    %p16 = pneg %p15
  $region15: #{encoder_forward.13} parent=0 // pred_check_branch
    %18 = sbr.rel (%p16) target = $region17
  $region16: #{encoder_forward.13} parent=0 // pred_region
    %vm19 = vcmask 523264
    %20 = vst.msk [vmem:[#allocation2] sm:$0xff] %vm19, 0.0
    %21 = vst.msk [vmem:[#allocation2 + $0x8] sm:$0xff] %vm19, 0.0
  $region17: #{encoder_forward.13} parent=0 // pred_fallthru
    _
  %v22 = vld [vmem:[#allocation2] sm:$0xff]
  %v23 = vld [vmem:[#allocation2 + $0x8] sm:$0xff]
  %v24 = vld [vmem:[%s0] sm:$0xff]
  %v25 = vld [vmem:[%s0 + $0x8] sm:$0xff]
  %v26 = vpack.c.bf16 %v25, %v24
  %v27 = vld [vmem:[%s1] sm:$0xf]
  %v28 = vld [vmem:[%s1 + $0x4] sm:$0xf]
  %v29 = vld [vmem:[%s1 + $0x8] sm:$0xf]
  %v30 = vld [vmem:[%s1 + $0xc] sm:$0xf]
  %v35 = vunpack.c.l.b16 %v27
  %v36 = vunpack.c.l.b16 %v28
  %v37 = vunpack.c.l.b16 %v29
  %v38 = vunpack.c.l.b16 %v30
  %v39 = vpack.c.b16 %v36, %v35
  %v40 = vpack.c.b16 %v38, %v37
  %vm43 = vcmask 261120
  %v45 = vsel %vm43, %v26, 0
  %47 = vmatpush.bf16.msra.mxu0 0
  %48 = vmatpush.bf16.msra.mxu0 0
  %49 = vmatpush.bf16.msra.mxu0 0
  %50 = vmatpush.bf16.msra.mxu0 0
  %51 = vmatpush.bf16.msra.mxu0 0
  %52 = vmatpush.bf16.msra.mxu0 0
  %53 = vmatpush.bf16.msra.mxu0 %v40
  %54 = vmatpush.bf16.msra.mxu0 %v39
  %55 = vmatmul.bf16.gmra.mxu0 %v45
  %v56 = vpop.f32.mrf.mxu0
  %v57 = vadd.f32 0.0, %v56
  %v58 = vpop.f32.mrf.mxu0
  %v59 = vadd.f32 0.0, %v58
  %60 = vdwg.mxu0
  %v61 = vadd.f32 %v22, %v57
  %v62 = vadd.f32 %v23, %v59
  %vm63 = vcmask 523264
  %64 = vst.msk [vmem:[#allocation2] sm:$0xff] %vm63, %v61
  %65 = vst.msk [vmem:[#allocation2 + $0x8] sm:$0xff] %vm63, %v62
  // Predicated region
  $region18: #{encoder_forward.13} parent=0 // pred_check
    %p66 = pneg %p15
  $region19: #{encoder_forward.13} parent=0 // pred_check_branch
    %68 = sbr.rel (%p66) target = $region21
  $region20: #{encoder_forward.13} parent=0 // pred_region
    %v69 = vld [vmem:[#allocation2] sm:$0xff]
    %v70 = vld [vmem:[#allocation2 + $0x8] sm:$0xff]
    %v71 = vld [vmem:[%s2] sm:$0x1]
    %v73 = vperm.slane %v71, 0
    %v75 = vadd.f32 %v69, %v73
    %v76 = vadd.f32 %v70, %v73
    %v77 = vmax.f32 %v75, 0.0
    %v78 = vmax.f32 %v76, 0.0
    %v79 = vpack.c.bf16 %v77, %v77
    %v80 = vpack.c.bf16 %v78, %v78
    %vm81 = vcmask 519168
    %82 = vst.msk [vmem:[%s3] sm:$0xf] %vm81, %v79
    %83 = vst.msk [vmem:[%s3 + $0x4] sm:$0xf] %vm81, %v80
  $region21: #{encoder_forward.13} parent=0 // pred_fallthru
    _
  // Predicated region
  $region22: #{encoder_forward.13} parent=0 // pred_check
    _
  $region23: #{encoder_forward.13} parent=0 // pred_check_branch
    %85 = sbr.rel (0) target = $region25
  $region24: #{encoder_forward.13} parent=0 // pred_region
    _
  $region25: #{encoder_forward.13} parent=0 // pred_fallthru
    _
  // Predicated region
  $region26: #{encoder_forward.13} parent=0 // pred_check
    _
  $region27: #{encoder_forward.13} parent=0 // pred_check_branch
    %87 = sbr.rel (0) target = $region29
  $region28: #{encoder_forward.13} parent=0 // pred_region
    _
  $region29: #{encoder_forward.13} parent=0 // pred_fallthru
    _

// kernel: encoder_forward.10
$region0: #{encoder_forward.10}
  #allocation0 [shape = 'u32[]', space=smem, size = 0x4, offset = 0x4, fixed_abs, tag = 'smem constant byte address 0x4 - core index']
  #allocation1 [shape = 'u32[72,128]{1,0:T(1,128)}', space=vmem, size = 0x9000, scoped, tag = 'internal scratch']
  #allocation2 [shape = 'f32[16,160]{1,0:T(8,128)}', space=vmem, size = 0x4000, scoped, tag = 'scratch operand']
  %s0 = inlined_call_operand.vmem [shape: f32[16,32], index: 0, kind: input, shape index: {}]
  %s1 = inlined_call_operand.vmem [shape: bf16[32,160], index: 1, kind: input, shape index: {}]
  %s2 = inlined_call_operand.vmem [shape: f32[1,160], index: 2, kind: input, shape index: {}]
  %s3 = inlined_call_operand.vmem [shape: bf16[16,160], index: 3, kind: output, shape index: {}]
  %s4 = sld [smem:[#allocation0]]
  $region30: #{encoder_forward.10} parent=0
    _
  %s6 = ssub.s32 1, %s4
  %s7 = scalar_select 0, %s6, %s4
  // Predicated region
  $region2: #{encoder_forward.10} parent=0 // pred_check
    _
  $region3: #{encoder_forward.10} parent=0 // pred_check_branch
    %9 = sbr.rel (0) target = $region5
  $region4: #{encoder_forward.10} parent=0 // pred_region
    _
  $region5: #{encoder_forward.10} parent=0 // pred_fallthru
    _
  // Predicated region
  $region6: #{encoder_forward.10} parent=0 // pred_check
    _
  $region7: #{encoder_forward.10} parent=0 // pred_check_branch
    %11 = sbr.rel (0) target = $region9
  $region8: #{encoder_forward.10} parent=0 // pred_region
    _
  $region9: #{encoder_forward.10} parent=0 // pred_fallthru
    _
  // Predicated region
  $region10: #{encoder_forward.10} parent=0 // pred_check
    _
  $region11: #{encoder_forward.10} parent=0 // pred_check_branch
    %13 = sbr.rel (0) target = $region13
  $region12: #{encoder_forward.10} parent=0 // pred_region
    _
  $region13: #{encoder_forward.10} parent=0 // pred_fallthru
    _
  %p15 = scmp.eq.s32.totalorder 0, 0
  // Predicated region
  $region14: #{encoder_forward.10} parent=0 // pred_check
    %p16 = pneg %p15
  $region15: #{encoder_forward.10} parent=0 // pred_check_branch
    %18 = sbr.rel (%p16) target = $region17
  $region16: #{encoder_forward.10} parent=0 // pred_region
    %19 = vst [vmem:[#allocation2] sm:$0xff] 0.0
    %vm20 = vcmask 261120
    %21 = vst.msk [vmem:[#allocation2 + $0x8] sm:$0xff] %vm20, 0.0
    %22 = vst [vmem:[#allocation2 + $0x10] sm:$0xff] 0.0
    %23 = vst.msk [vmem:[#allocation2 + $0x18] sm:$0xff] %vm20, 0.0
  $region17: #{encoder_forward.10} parent=0 // pred_fallthru
    _
  %v24 = vld [vmem:[#allocation2] sm:$0xff]
  %v25 = vld [vmem:[#allocation2 + $0x8] sm:$0xff]
  %v26 = vld [vmem:[#allocation2 + $0x10] sm:$0xff]
  %v27 = vld [vmem:[#allocation2 + $0x18] sm:$0xff]
  %v28 = vld [vmem:[%s0] sm:$0xff]
  %v29 = vld [vmem:[%s0 + $0x8] sm:$0xff]
  %v30 = vpack.c.bf16 %v29, %v28
  %v31 = vld [vmem:[%s1] sm:$0xff]
  %v32 = vld [vmem:[%s1 + $0x8] sm:$0xff]
  %v33 = vld [vmem:[%s1 + $0x10] sm:$0xff]
  %v34 = vld [vmem:[%s1 + $0x18] sm:$0xff]
  %v39 = vunpack.c.l.b16 %v31
  %v40 = vunpack.c.h.b16 %v31
  %v41 = vunpack.c.l.b16 %v32
  %v42 = vunpack.c.h.b16 %v32
  %v43 = vunpack.c.l.b16 %v33
  %v44 = vunpack.c.h.b16 %v33
  %v45 = vunpack.c.l.b16 %v34
  %v46 = vunpack.c.h.b16 %v34
  %v47 = vpack.c.b16 %v41, %v39
  %v48 = vpack.c.b16 %v42, %v40
  %v49 = vpack.c.b16 %v45, %v43
  %v50 = vpack.c.b16 %v46, %v44
  %vm55 = vcmask 261120
  %v57 = vsel %vm55, %v30, 0
  %59 = vmatpush.bf16.msra.mxu0 0
  %60 = vmatpush.bf16.msra.mxu0 0
  %61 = vmatpush.bf16.msra.mxu0 0
  %62 = vmatpush.bf16.msra.mxu0 0
  %63 = vmatpush.bf16.msra.mxu0 0
  %64 = vmatpush.bf16.msra.mxu0 0
  %65 = vmatpush.bf16.msra.mxu0 %v49
  %66 = vmatpush.bf16.msra.mxu0 %v47
  %67 = vmatmul.bf16.gmra.mxu0 %v57
  %v68 = vpop.f32.mrf.mxu0
  %v69 = vadd.f32 0.0, %v68
  %v70 = vpop.f32.mrf.mxu0
  %v71 = vadd.f32 0.0, %v70
  %72 = vdwg.mxu0
  %73 = vmatpush.bf16.msra.mxu0 0
  %74 = vmatpush.bf16.msra.mxu0 0
  %75 = vmatpush.bf16.msra.mxu0 0
  %76 = vmatpush.bf16.msra.mxu0 0
  %77 = vmatpush.bf16.msra.mxu0 0
  %78 = vmatpush.bf16.msra.mxu0 0
  %79 = vmatpush.bf16.msra.mxu0 %v50
  %80 = vmatpush.bf16.msra.mxu0 %v48
  %81 = vmatmul.bf16.gmra.mxu0 %v57
  %v82 = vpop.f32.mrf.mxu0
  %v83 = vadd.f32 0.0, %v82
  %v84 = vpop.f32.mrf.mxu0
  %v85 = vadd.f32 0.0, %v84
  %86 = vdwg.mxu0
  %v87 = vadd.f32 %v24, %v69
  %v88 = vadd.f32 %v25, %v83
  %v89 = vadd.f32 %v26, %v71
  %v90 = vadd.f32 %v27, %v85
  %91 = vst [vmem:[#allocation2] sm:$0xff] %v87
  %92 = vst.msk [vmem:[#allocation2 + $0x8] sm:$0xff] %vm55, %v88
  %93 = vst [vmem:[#allocation2 + $0x10] sm:$0xff] %v89
  %94 = vst.msk [vmem:[#allocation2 + $0x18] sm:$0xff] %vm55, %v90
  // Predicated region
  $region18: #{encoder_forward.10} parent=0 // pred_check
    %p95 = pneg %p15
  $region19: #{encoder_forward.10} parent=0 // pred_check_branch
    %97 = sbr.rel (%p95) target = $region21
  $region20: #{encoder_forward.10} parent=0 // pred_region
    %v98 = vld [vmem:[#allocation2] sm:$0xff]
    %v99 = vld [vmem:[#allocation2 + $0x8] sm:$0xff]
    %v100 = vld [vmem:[#allocation2 + $0x10] sm:$0xff]
    %v101 = vld [vmem:[#allocation2 + $0x18] sm:$0xff]
    %v102 = vld [vmem:[%s2] sm:$0x3]
    %v104 = vperm.slane %v102, 0
    %v105 = vperm.slane %v102, 1
    %v108 = vadd.f32 %v98, %v104
    %v109 = vadd.f32 %v99, %v105
    %v110 = vadd.f32 %v100, %v104
    %v111 = vadd.f32 %v101, %v105
    %v112 = vpack.c.bf16 %v109, %v108
    %v113 = vpack.c.bf16 %v111, %v110
    %vm114 = vcmask 1043456
    %vm115 = vcmask 261124
    %vm116 = vmor %vm115, %vm114
    %117 = vst.msk [vmem:[%s3] sm:$0xff] %vm116, %v112
    %118 = vst.msk [vmem:[%s3 + $0x8] sm:$0xff] %vm116, %v113
  $region21: #{encoder_forward.10} parent=0 // pred_fallthru
    _
  // Predicated region
  $region22: #{encoder_forward.10} parent=0 // pred_check
    _
  $region23: #{encoder_forward.10} parent=0 // pred_check_branch
    %120 = sbr.rel (0) target = $region25
  $region24: #{encoder_forward.10} parent=0 // pred_region
    _
  $region25: #{encoder_forward.10} parent=0 // pred_fallthru
    _
  // Predicated region
  $region26: #{encoder_forward.10} parent=0 // pred_check
    _
  $region27: #{encoder_forward.10} parent=0 // pred_check_branch
    %122 = sbr.rel (0) target = $region29
  $region28: #{encoder_forward.10} parent=0 // pred_region
    _
  $region29: #{encoder_forward.10} parent=0 // pred_fallthru
    _

// kernel: encoder_forward.11
$region0: #{encoder_forward.11}
  #allocation0 [shape = 'u32[]', space=smem, size = 0x4, offset = 0x4, fixed_abs, tag = 'smem constant byte address 0x4 - core index']
  #allocation1 [shape = 'u32[72,128]{1,0:T(1,128)}', space=vmem, size = 0x9000, scoped, tag = 'internal scratch']
  %s0 = inlined_call_operand.vmem [shape: f32[2,1,8], index: 0, kind: input, shape index: {}]
  %s1 = inlined_call_operand.vmem [shape: bf16[2,8,160], index: 1, kind: input, shape index: {}]
  %s2 = inlined_call_operand.vmem [shape: bf16[2,8,32], index: 2, kind: output, shape index: {}]
  %s3 = sld [smem:[#allocation0]]
  $region41: #{encoder_forward.11} parent=0
    _
  %s5 = ssub.s32 1, %s3
  %s6 = scalar_select 0, %s5, %s3
  loop: start=0, step=1, limit=4
  $region2: #{encoder_forward.11} parent=0 // loop_pre_header
    _
  $region3: #{encoder_forward.11} parent=0 // loop_header
    %s8 = sphi 0, %s12
    %p9 = scmp.ge.s32.totalorder %s8, 4
    %s18 = sphi 0, %s20
    %s21 = sphi 0, %s18
    %s22 = sphi 0, %s21
    %s38 = sphi 0, %s22
    %s44 = sphi 0, %s46
    %s47 = sphi 0, %s44
    %s48 = sphi 0, %s47
    %s64 = sphi 0, %s48
    %s70 = sphi 0, %s72
    %s73 = sphi 0, %s70
    %s74 = sphi 0, %s73
    %s90 = sphi 0, %s74
  $region4: #{encoder_forward.11} parent=0 // loop_header_branch
    %11 = sbr.rel (%p9) target = $region8
  $region5: #{encoder_forward.11} parent=0 // loop_body
    %s13 = ssub.s32 %s8, 1
    %s14 = ssub.s32 %s8, 2
    %s15 = sadd.s32 %s8, 1
    %s16 = ssub.s32 %s8, %s15
    %p17 = scmp.eq.s32.totalorder %s16, 0
    %s19 = sadd.s32 %s18, 1
    %s20 = scalar_select %p17, %s18, %s19
    %p23 = pneg %p17
    %p24 = scmp.eq.s32.totalorder %s8, 1
    %p25 = por %p23, %p24
    %p26 = scmp.ne.s32.totalorder %s18, %s21
    %p27 = scmp.eq.s32.totalorder %s8, 0
    %p28 = por %p26, %p27
    %p29 = scmp.ne.s32.totalorder %s18, %s21
    %p30 = scmp.eq.s32.totalorder %s13, 1
    %p31 = por %p29, %p30
    %p32 = scmp.ne.s32.totalorder %s21, %s22
    %p33 = scmp.eq.s32.totalorder %s13, 0
    %p34 = por %p32, %p33
    %p35 = scmp.ne.s32.totalorder %s21, %s22
    %p36 = scmp.eq.s32.totalorder %s14, 1
    %p37 = por %p35, %p36
    %p39 = scmp.ne.s32.totalorder %s22, %s38
    %p40 = scmp.eq.s32.totalorder %s14, 0
    %p41 = por %p39, %p40
    %s42 = ssub.s32 %s8, %s15
    %p43 = scmp.eq.s32.totalorder %s42, 0
    %s45 = sadd.s32 %s44, 1
    %s46 = scalar_select %p43, %s44, %s45
    %p49 = pneg %p43
    %p50 = scmp.eq.s32.totalorder %s8, 1
    %p51 = por %p49, %p50
    %p52 = scmp.ne.s32.totalorder %s44, %s47
    %p53 = scmp.eq.s32.totalorder %s8, 0
    %p54 = por %p52, %p53
    %p55 = scmp.ne.s32.totalorder %s44, %s47
    %p56 = scmp.eq.s32.totalorder %s13, 1
    %p57 = por %p55, %p56
    %p58 = scmp.ne.s32.totalorder %s47, %s48
    %p59 = scmp.eq.s32.totalorder %s13, 0
    %p60 = por %p58, %p59
    %p61 = scmp.ne.s32.totalorder %s47, %s48
    %p62 = scmp.eq.s32.totalorder %s14, 1
    %p63 = por %p61, %p62
    %p65 = scmp.ne.s32.totalorder %s48, %s64
    %p66 = scmp.eq.s32.totalorder %s14, 0
    %p67 = por %p65, %p66
    %s68 = ssub.s32 %s8, %s15
    %p69 = scmp.eq.s32.totalorder %s68, 0
    %s71 = sadd.s32 %s70, 1
    %s72 = scalar_select %p69, %s70, %s71
    %p75 = pneg %p69
    %p76 = scmp.eq.s32.totalorder %s8, 1
    %p77 = por %p75, %p76
    %p78 = scmp.ne.s32.totalorder %s70, %s73
    %p79 = scmp.eq.s32.totalorder %s8, 0
    %p80 = por %p78, %p79
    %p81 = scmp.ne.s32.totalorder %s70, %s73
    %p82 = scmp.eq.s32.totalorder %s13, 1
    %p83 = por %p81, %p82
    %p84 = scmp.ne.s32.totalorder %s73, %s74
    %p85 = scmp.eq.s32.totalorder %s13, 0
    %p86 = por %p84, %p85
    %p87 = scmp.ne.s32.totalorder %s73, %s74
    %p88 = scmp.eq.s32.totalorder %s14, 1
    %p89 = por %p87, %p88
    %p91 = scmp.ne.s32.totalorder %s74, %s90
    %p92 = scmp.eq.s32.totalorder %s14, 0
    %p93 = por %p91, %p92
    %p94 = scmp.le.s32.totalorder 1, %s8
    %p95 = scmp.lt.s32.totalorder %s8, 3
    %p96 = pnand %p94, %p95
    %p97 = pneg %p96
    // Predicated region
    $region9: #{encoder_forward.11} parent=5 // pred_check
      _
    $region10: #{encoder_forward.11} parent=5 // pred_check_branch
      %99 = sbr.rel (%p96) target = $region12
    $region11: #{encoder_forward.11} parent=5 // pred_region
      %s100 = ssub.s32 %s8, 1
    $region12: #{encoder_forward.11} parent=5 // pred_fallthru
      _
    %p101 = scmp.lt.s32.totalorder %s8, 2
    // Predicated region
    $region13: #{encoder_forward.11} parent=5 // pred_check
      %p102 = pneg %p101
    $region14: #{encoder_forward.11} parent=5 // pred_check_branch
      %104 = sbr.rel (%p102) target = $region16
    $region15: #{encoder_forward.11} parent=5 // pred_region
      // Predicated region
      $region17: #{encoder_forward.11} parent=15 // pred_check
        %p105 = pneg %p28
      $region18: #{encoder_forward.11} parent=15 // pred_check_branch
        %107 = sbr.rel (%p105) target = $region20
      $region19: #{encoder_forward.11} parent=15 // pred_region
        %p108 = scmp.lt.s32.totalorder %s8, 1
        %s109 = scalar_select %p108, %s8, 1
        %s110 = scalar_lea.vmem %s0, %s109
      $region20: #{encoder_forward.11} parent=15 // pred_fallthru
        _
      // Predicated region
      $region21: #{encoder_forward.11} parent=15 // pred_check
        %p111 = pneg %p54
      $region22: #{encoder_forward.11} parent=15 // pred_check_branch
        %113 = sbr.rel (%p111) target = $region24
      $region23: #{encoder_forward.11} parent=15 // pred_region
        %p114 = scmp.lt.s32.totalorder %s8, 1
        %s115 = scalar_select %p114, %s8, 1
        %s116 = smul.addr %s115, 2
        %s117 = smul.addr %s116, 4
        %s118 = scalar_lea.vmem %s1, %s117
      $region24: #{encoder_forward.11} parent=15 // pred_fallthru
        _
    $region16: #{encoder_forward.11} parent=5 // pred_fallthru
      _
    %p119 = scmp.le.s32.totalorder 1, %s8
    %p120 = scmp.lt.s32.totalorder %s8, 3
    %p121 = pnand %p119, %p120
    %p122 = pneg %p121
    // Predicated region
    $region25: #{encoder_forward.11} parent=5 // pred_check
      _
    $region26: #{encoder_forward.11} parent=5 // pred_check_branch
      %124 = sbr.rel (%p121) target = $region28
    $region27: #{encoder_forward.11} parent=5 // pred_region
      %s125 = ssub.s32 %s8, 1
      %p126 = scmp.lt.s32.totalorder %s13, 1
      %s127 = scalar_select %p126, %s13, 1
      %s128 = scalar_lea.vmem %s0, %s127
      %p129 = pneg %p34
      %p130 = pneg %p31
      %p131 = scmp.lt.s32.totalorder %s13, 1
      %s132 = scalar_select %p131, %s13, 1
      %s133 = smul.addr %s132, 2
      %s134 = smul.addr %s133, 4
      %s135 = scalar_lea.vmem %s1, %s134
      %p136 = pneg %p60
      %p137 = pneg %p57
      %p138 = pneg %p86
      %p139 = pneg %p83
      %p140 = scmp.lt.s32.totalorder %s13, 1
      %s141 = scalar_select %p140, %s13, 1
      %s142 = smul.addr %s141, 4
      %s143 = scalar_lea.vmem %s2, %s142
      %p144 = scmp.lt.s32.totalorder %s13, 1
      %s145 = scalar_select %p144, %s13, 1
      %s146 = scalar_lea.vmem %s0, %s145
      %p147 = scmp.lt.s32.totalorder %s13, 1
      %s148 = scalar_select %p147, %s13, 1
      %s149 = smul.addr %s148, 2
      %s150 = smul.addr %s149, 4
      %s151 = scalar_lea.vmem %s1, %s150
      %p152 = scmp.lt.s32.totalorder %s13, 1
      %s153 = scalar_select %p152, %s13, 1
      %s154 = smul.addr %s153, 4
      %s155 = scalar_lea.vmem %s2, %s154
      %v157 = vld [vmem:[%s146] sm:$0x1]
      %v158 = vld [vmem:[%s151] sm:$0xff]
      %v159 = vunpack.c.l.bf16 %v158
      %v160 = vmul.f32 %v159, 0.35351563
      %v161 = vpack.c.bf16 %v160, %v160
      %v163 = vperm.slane %v157, 0
      %v166 = vunpack.c.l.b16 %v158
      %v167 = vpack.c.b16 %v166, %v166
      %168 = vrot.lane.b32.xlu0 %v167, 64
      %v169 = vpop.permute.xlu0 %168
      %vm170 = vcmask 64512
      %v172 = vsel %vm170, %v161, 0
      %v175 = vsel %vm170, %v169, 0
      %177 = vmatpush.bf16.xpose.msra.mxu0 0
      %178 = vmatpush.bf16.xpose.msra.mxu0 0
      %179 = vmatpush.bf16.xpose.msra.mxu0 0
      %180 = vmatpush.bf16.xpose.msra.mxu0 0
      %181 = vmatpush.bf16.xpose.msra.mxu0 0
      %182 = vmatpush.bf16.xpose.msra.mxu0 0
      %183 = vmatpush.bf16.xpose.msra.mxu0 0
      %184 = vmatpush.bf16.xpose.msra.mxu0 %v175
      %185 = vmatmul.bf16.gmra.mxu0 %v172
      %v186 = vpop.f32.mrf.mxu0
      %v187 = vadd.f32 %v163, %v186
      %v188 = vpop.f32.mrf.mxu0
      %189 = vdwg.mxu0
      %191 = vrot.lane.b32.xlu0 %v161, 96
      %v192 = vpop.permute.xlu0 %191
      %193 = vrot.lane.b32.xlu0 %v167, 32
      %v194 = vpop.permute.xlu0 %193
      %v196 = vsel %vm170, %v192, 0
      %v199 = vsel %vm170, %v194, 0
      %201 = vmatpush.bf16.xpose.msra.mxu0 0
      %202 = vmatpush.bf16.xpose.msra.mxu0 0
      %203 = vmatpush.bf16.xpose.msra.mxu0 0
      %204 = vmatpush.bf16.xpose.msra.mxu0 0
      %205 = vmatpush.bf16.xpose.msra.mxu0 0
      %206 = vmatpush.bf16.xpose.msra.mxu0 0
      %207 = vmatpush.bf16.xpose.msra.mxu0 0
      %208 = vmatpush.bf16.xpose.msra.mxu0 %v199
      %209 = vmatmul.bf16.gmra.mxu0 %v196
      %v210 = vpop.f32.mrf.mxu0
      %v211 = vadd.f32 %v163, %v210
      %v212 = vpop.f32.mrf.mxu0
      %213 = vdwg.mxu0
      %v214 = vsel %vm170, %v187, -inf
      %215 = vmax.xlane.f32.xlu0 %v214
      %v216 = vpop.xlane.xlu0 %215
      %v217 = vsub.f32 %v187, %v216
      %v218 = vmul.f32 %v217, 1.442695
      %v219 = vpow.pop %v218
      %v220 = vsel %vm170, %v219, 0.0
      %221 = vadd.xlane.f32.xlu0 %v220
      %v222 = vpop.xlane.xlu0 %221
      %v223 = vrcp.pop %v222
      %v224 = vmul.f32 %v219, %v223
      %v225 = vsel %vm170, %v211, -inf
      %226 = vmax.xlane.f32.xlu0 %v225
      %v227 = vpop.xlane.xlu0 %226
      %v228 = vsub.f32 %v211, %v227
      %v229 = vmul.f32 %v228, 1.442695
      %v230 = vpow.pop %v229
      %v231 = vsel %vm170, %v230, 0.0
      %232 = vadd.xlane.f32.xlu0 %v231
      %v233 = vpop.xlane.xlu0 %232
      %v234 = vrcp.pop %v233
      %v235 = vmul.f32 %v230, %v234
      %v236 = vmul.f32 %v235, 0.5
      %v237 = vsub.f32 %v224, %v236
      %v238 = vpack.c.bf16 %v237, %v237
      %v239 = vunpack.c.h.b16 %v158
      %v240 = vpack.c.b16 %v239, %v239
      %v242 = vsel %vm170, %v238, 0
      %vm244 = vcmask 1043456
      %v246 = vsel %vm244, %v240, 0
      %248 = vmatpush.bf16.msra.mxu0 0
      %249 = vmatpush.bf16.msra.mxu0 0
      %250 = vmatpush.bf16.msra.mxu0 0
      %251 = vmatpush.bf16.msra.mxu0 0
      %252 = vmatpush.bf16.msra.mxu0 0
      %253 = vmatpush.bf16.msra.mxu0 0
      %254 = vmatpush.bf16.msra.mxu0 0
      %255 = vmatpush.bf16.msra.mxu0 %v246
      %256 = vmatmul.bf16.gmra.mxu0 %v242
      %v257 = vpop.f32.mrf.mxu0
      %v258 = vadd.f32 0.0, %v257
      %v259 = vpop.f32.mrf.mxu0
      %260 = vdwg.mxu0
      %v261 = vpack.c.bf16 %v258, %v258
      %vm262 = vcmask 60416
      %263 = vst.msk [vmem:[%s155] sm:$0xf] %vm262, %v261
      %264 = vrot.lane.b32.xlu0 %v161, 120
      %v265 = vpop.permute.xlu0 %264
      %266 = vrot.lane.b32.xlu0 %v167, 56
      %v267 = vpop.permute.xlu0 %266
      %v269 = vsel %vm170, %v265, 0
      %v272 = vsel %vm170, %v267, 0
      %274 = vmatpush.bf16.xpose.msra.mxu0 0
      %275 = vmatpush.bf16.xpose.msra.mxu0 0
      %276 = vmatpush.bf16.xpose.msra.mxu0 0
      %277 = vmatpush.bf16.xpose.msra.mxu0 0
      %278 = vmatpush.bf16.xpose.msra.mxu0 0
      %279 = vmatpush.bf16.xpose.msra.mxu0 0
      %280 = vmatpush.bf16.xpose.msra.mxu0 0
      %281 = vmatpush.bf16.xpose.msra.mxu0 %v272
      %282 = vmatmul.bf16.gmra.mxu0 %v269
      %v283 = vpop.f32.mrf.mxu0
      %v284 = vadd.f32 %v163, %v283
      %v285 = vpop.f32.mrf.mxu0
      %286 = vdwg.mxu0
      %287 = vrot.lane.b32.xlu0 %v161, 88
      %v288 = vpop.permute.xlu0 %287
      %289 = vrot.lane.b32.xlu0 %v167, 24
      %v290 = vpop.permute.xlu0 %289
      %v292 = vsel %vm170, %v288, 0
      %v295 = vsel %vm170, %v290, 0
      %297 = vmatpush.bf16.xpose.msra.mxu0 0
      %298 = vmatpush.bf16.xpose.msra.mxu0 0
      %299 = vmatpush.bf16.xpose.msra.mxu0 0
      %300 = vmatpush.bf16.xpose.msra.mxu0 0
      %301 = vmatpush.bf16.xpose.msra.mxu0 0
      %302 = vmatpush.bf16.xpose.msra.mxu0 0
      %303 = vmatpush.bf16.xpose.msra.mxu0 0
      %304 = vmatpush.bf16.xpose.msra.mxu0 %v295
      %305 = vmatmul.bf16.gmra.mxu0 %v292
      %v306 = vpop.f32.mrf.mxu0
      %v307 = vadd.f32 %v163, %v306
      %v308 = vpop.f32.mrf.mxu0
      %309 = vdwg.mxu0
      %v310 = vsel %vm170, %v284, -inf
      %311 = vmax.xlane.f32.xlu0 %v310
      %v312 = vpop.xlane.xlu0 %311
      %v313 = vsub.f32 %v284, %v312
      %v314 = vmul.f32 %v313, 1.442695
      %v315 = vpow.pop %v314
      %v316 = vsel %vm170, %v315, 0.0
      %317 = vadd.xlane.f32.xlu0 %v316
      %v318 = vpop.xlane.xlu0 %317
      %v319 = vrcp.pop %v318
      %v320 = vmul.f32 %v315, %v319
      %v321 = vsel %vm170, %v307, -inf
      %322 = vmax.xlane.f32.xlu0 %v321
      %v323 = vpop.xlane.xlu0 %322
      %v324 = vsub.f32 %v307, %v323
      %v325 = vmul.f32 %v324, 1.442695
      %v326 = vpow.pop %v325
      %v327 = vsel %vm170, %v326, 0.0
      %328 = vadd.xlane.f32.xlu0 %v327
      %v329 = vpop.xlane.xlu0 %328
      %v330 = vrcp.pop %v329
      %v331 = vmul.f32 %v326, %v330
      %v332 = vmul.f32 %v331, 0.5
      %v333 = vsub.f32 %v320, %v332
      %v334 = vpack.c.bf16 %v333, %v333
      %335 = vrot.lane.b32.xlu0 %v240, 120
      %v336 = vpop.permute.xlu0 %335
      %v338 = vsel %vm170, %v334, 0
      %v341 = vsel %vm244, %v336, 0
      %343 = vmatpush.bf16.msra.mxu0 0
      %344 = vmatpush.bf16.msra.mxu0 0
      %345 = vmatpush.bf16.msra.mxu0 0
      %346 = vmatpush.bf16.msra.mxu0 0
      %347 = vmatpush.bf16.msra.mxu0 0
      %348 = vmatpush.bf16.msra.mxu0 0
      %349 = vmatpush.bf16.msra.mxu0 0
      %350 = vmatpush.bf16.msra.mxu0 %v341
      %351 = vmatmul.bf16.gmra.mxu0 %v338
      %v352 = vpop.f32.mrf.mxu0
      %v353 = vadd.f32 0.0, %v352
      %v354 = vpop.f32.mrf.mxu0
      %355 = vdwg.mxu0
      %v356 = vpack.c.bf16 %v353, %v353
      %358 = vrot.lane.b32.xlu0 %v356, 8
      %v359 = vpop.permute.xlu0 %358
      %vm361 = vcmask 126016
      %362 = vst.msk [vmem:[%s155] sm:$0xf] %vm361, %v359
      %363 = vrot.lane.b32.xlu0 %v161, 112
      %v364 = vpop.permute.xlu0 %363
      %365 = vrot.lane.b32.xlu0 %v167, 48
      %v366 = vpop.permute.xlu0 %365
      %v368 = vsel %vm170, %v364, 0
      %v371 = vsel %vm170, %v366, 0
      %373 = vmatpush.bf16.xpose.msra.mxu0 0
      %374 = vmatpush.bf16.xpose.msra.mxu0 0
      %375 = vmatpush.bf16.xpose.msra.mxu0 0
      %376 = vmatpush.bf16.xpose.msra.mxu0 0
      %377 = vmatpush.bf16.xpose.msra.mxu0 0
      %378 = vmatpush.bf16.xpose.msra.mxu0 0
      %379 = vmatpush.bf16.xpose.msra.mxu0 0
      %380 = vmatpush.bf16.xpose.msra.mxu0 %v371
      %381 = vmatmul.bf16.gmra.mxu0 %v368
      %v382 = vpop.f32.mrf.mxu0
      %v383 = vadd.f32 %v163, %v382
      %v384 = vpop.f32.mrf.mxu0
      %385 = vdwg.mxu0
      %386 = vrot.lane.b32.xlu0 %v161, 80
      %v387 = vpop.permute.xlu0 %386
      %388 = vrot.lane.b32.xlu0 %v167, 16
      %v389 = vpop.permute.xlu0 %388
      %v391 = vsel %vm170, %v387, 0
      %v394 = vsel %vm170, %v389, 0
      %396 = vmatpush.bf16.xpose.msra.mxu0 0
      %397 = vmatpush.bf16.xpose.msra.mxu0 0
      %398 = vmatpush.bf16.xpose.msra.mxu0 0
      %399 = vmatpush.bf16.xpose.msra.mxu0 0
      %400 = vmatpush.bf16.xpose.msra.mxu0 0
      %401 = vmatpush.bf16.xpose.msra.mxu0 0
      %402 = vmatpush.bf16.xpose.msra.mxu0 0
      %403 = vmatpush.bf16.xpose.msra.mxu0 %v394
      %404 = vmatmul.bf16.gmra.mxu0 %v391
      %v405 = vpop.f32.mrf.mxu0
      %v406 = vadd.f32 %v163, %v405
      %v407 = vpop.f32.mrf.mxu0
      %408 = vdwg.mxu0
      %v409 = vsel %vm170, %v383, -inf
      %410 = vmax.xlane.f32.xlu0 %v409
      %v411 = vpop.xlane.xlu0 %410
      %v412 = vsub.f32 %v383, %v411
      %v413 = vmul.f32 %v412, 1.442695
      %v414 = vpow.pop %v413
      %v415 = vsel %vm170, %v414, 0.0
      %416 = vadd.xlane.f32.xlu0 %v415
      %v417 = vpop.xlane.xlu0 %416
      %v418 = vrcp.pop %v417
      %v419 = vmul.f32 %v414, %v418
      %v420 = vsel %vm170, %v406, -inf
      %421 = vmax.xlane.f32.xlu0 %v420
      %v422 = vpop.xlane.xlu0 %421
      %v423 = vsub.f32 %v406, %v422
      %v424 = vmul.f32 %v423, 1.442695
      %v425 = vpow.pop %v424
      %v426 = vsel %vm170, %v425, 0.0
      %427 = vadd.xlane.f32.xlu0 %v426
      %v428 = vpop.xlane.xlu0 %427
      %v429 = vrcp.pop %v428
      %v430 = vmul.f32 %v425, %v429
      %v431 = vmul.f32 %v430, 0.5
      %v432 = vsub.f32 %v419, %v431
      %v433 = vpack.c.bf16 %v432, %v432
      %434 = vrot.lane.b32.xlu0 %v240, 112
      %v435 = vpop.permute.xlu0 %434
      %v437 = vsel %vm170, %v433, 0
      %v440 = vsel %vm244, %v435, 0
      %442 = vmatpush.bf16.msra.mxu0 0
      %443 = vmatpush.bf16.msra.mxu0 0
      %444 = vmatpush.bf16.msra.mxu0 0
      %445 = vmatpush.bf16.msra.mxu0 0
      %446 = vmatpush.bf16.msra.mxu0 0
      %447 = vmatpush.bf16.msra.mxu0 0
      %448 = vmatpush.bf16.msra.mxu0 0
      %449 = vmatpush.bf16.msra.mxu0 %v440
      %450 = vmatmul.bf16.gmra.mxu0 %v437
      %v451 = vpop.f32.mrf.mxu0
      %v452 = vadd.f32 0.0, %v451
      %v453 = vpop.f32.mrf.mxu0
      %454 = vdwg.mxu0
      %v455 = vpack.c.bf16 %v452, %v452
      %457 = vrot.lane.b32.xlu0 %v455, 16
      %v458 = vpop.permute.xlu0 %457
      %vm460 = vcmask 191616
      %461 = vst.msk [vmem:[%s155] sm:$0xf] %vm460, %v458
      %462 = vrot.lane.b32.xlu0 %v161, 104
      %v463 = vpop.permute.xlu0 %462
      %464 = vrot.lane.b32.xlu0 %v167, 40
      %v465 = vpop.permute.xlu0 %464
      %v467 = vsel %vm170, %v463, 0
      %v470 = vsel %vm170, %v465, 0
      %472 = vmatpush.bf16.xpose.msra.mxu0 0
      %473 = vmatpush.bf16.xpose.msra.mxu0 0
      %474 = vmatpush.bf16.xpose.msra.mxu0 0
      %475 = vmatpush.bf16.xpose.msra.mxu0 0
      %476 = vmatpush.bf16.xpose.msra.mxu0 0
      %477 = vmatpush.bf16.xpose.msra.mxu0 0
      %478 = vmatpush.bf16.xpose.msra.mxu0 0
      %479 = vmatpush.bf16.xpose.msra.mxu0 %v470
      %480 = vmatmul.bf16.gmra.mxu0 %v467
      %v481 = vpop.f32.mrf.mxu0
      %v482 = vadd.f32 %v163, %v481
      %v483 = vpop.f32.mrf.mxu0
      %484 = vdwg.mxu0
      %485 = vrot.lane.b32.xlu0 %v161, 72
      %v486 = vpop.permute.xlu0 %485
      %487 = vrot.lane.b32.xlu0 %v167, 8
      %v488 = vpop.permute.xlu0 %487
      %v490 = vsel %vm170, %v486, 0
      %v493 = vsel %vm170, %v488, 0
      %495 = vmatpush.bf16.xpose.msra.mxu0 0
      %496 = vmatpush.bf16.xpose.msra.mxu0 0
      %497 = vmatpush.bf16.xpose.msra.mxu0 0
      %498 = vmatpush.bf16.xpose.msra.mxu0 0
      %499 = vmatpush.bf16.xpose.msra.mxu0 0
      %500 = vmatpush.bf16.xpose.msra.mxu0 0
      %501 = vmatpush.bf16.xpose.msra.mxu0 0
      %502 = vmatpush.bf16.xpose.msra.mxu0 %v493
      %503 = vmatmul.bf16.gmra.mxu0 %v490
      %v504 = vpop.f32.mrf.mxu0
      %v505 = vadd.f32 %v163, %v504
      %v506 = vpop.f32.mrf.mxu0
      %507 = vdwg.mxu0
      %v508 = vsel %vm170, %v482, -inf
      %509 = vmax.xlane.f32.xlu0 %v508
      %v510 = vpop.xlane.xlu0 %509
      %v511 = vsub.f32 %v482, %v510
      %v512 = vmul.f32 %v511, 1.442695
      %v513 = vpow.pop %v512
      %v514 = vsel %vm170, %v513, 0.0
      %515 = vadd.xlane.f32.xlu0 %v514
      %v516 = vpop.xlane.xlu0 %515
      %v517 = vrcp.pop %v516
      %v518 = vmul.f32 %v513, %v517
      %v519 = vsel %vm170, %v505, -inf
      %520 = vmax.xlane.f32.xlu0 %v519
      %v521 = vpop.xlane.xlu0 %520
      %v522 = vsub.f32 %v505, %v521
      %v523 = vmul.f32 %v522, 1.442695
      %v524 = vpow.pop %v523
      %v525 = vsel %vm170, %v524, 0.0
      %526 = vadd.xlane.f32.xlu0 %v525
      %v527 = vpop.xlane.xlu0 %526
      %v528 = vrcp.pop %v527
      %v529 = vmul.f32 %v524, %v528
      %v530 = vmul.f32 %v529, 0.5
      %v531 = vsub.f32 %v518, %v530
      %v532 = vpack.c.bf16 %v531, %v531
      %533 = vrot.lane.b32.xlu0 %v240, 104
      %v534 = vpop.permute.xlu0 %533
      %v536 = vsel %vm170, %v532, 0
      %v539 = vsel %vm244, %v534, 0
      %541 = vmatpush.bf16.msra.mxu0 0
      %542 = vmatpush.bf16.msra.mxu0 0
      %543 = vmatpush.bf16.msra.mxu0 0
      %544 = vmatpush.bf16.msra.mxu0 0
      %545 = vmatpush.bf16.msra.mxu0 0
      %546 = vmatpush.bf16.msra.mxu0 0
      %547 = vmatpush.bf16.msra.mxu0 0
      %548 = vmatpush.bf16.msra.mxu0 %v539
      %549 = vmatmul.bf16.gmra.mxu0 %v536
      %v550 = vpop.f32.mrf.mxu0
      %v551 = vadd.f32 0.0, %v550
      %v552 = vpop.f32.mrf.mxu0
      %553 = vdwg.mxu0
      %v554 = vpack.c.bf16 %v551, %v551
      %556 = vrot.lane.b32.xlu0 %v554, 24
      %v557 = vpop.permute.xlu0 %556
      %vm559 = vcmask 257216
      %560 = vst.msk [vmem:[%s155] sm:$0xf] %vm559, %v557
      %p561 = scmp.lt.s32.totalorder %s13, 1
      %s562 = scalar_select %p561, %s13, 1
      %s563 = smul.addr %s562, 4
      %s564 = scalar_lea.vmem %s2, %s563
      // Predicated region
      $region29: #{encoder_forward.11} parent=27 // pred_check
        %p565 = pneg %p83
      $region30: #{encoder_forward.11} parent=27 // pred_check_branch
        %567 = sbr.rel (%p565) target = $region32
      $region31: #{encoder_forward.11} parent=27 // pred_region
        _
      $region32: #{encoder_forward.11} parent=27 // pred_fallthru
        _
    $region28: #{encoder_forward.11} parent=5 // pred_fallthru
      _
    %p568 = scmp.le.s32.totalorder 2, %s8
    // Predicated region
    $region33: #{encoder_forward.11} parent=5 // pred_check
      %p569 = pneg %p568
    $region34: #{encoder_forward.11} parent=5 // pred_check_branch
      %571 = sbr.rel (%p569) target = $region36
    $region35: #{encoder_forward.11} parent=5 // pred_region
      %s572 = ssub.s32 %s8, 2
      // Predicated region
      $region37: #{encoder_forward.11} parent=35 // pred_check
        %p573 = pneg %p89
      $region38: #{encoder_forward.11} parent=35 // pred_check_branch
        %575 = sbr.rel (%p573) target = $region40
      $region39: #{encoder_forward.11} parent=35 // pred_region
        %p576 = scmp.lt.s32.totalorder %s14, 1
        %s577 = scalar_select %p576, %s14, 1
        %s578 = smul.addr %s577, 4
        %s579 = scalar_lea.vmem %s2, %s578
      $region40: #{encoder_forward.11} parent=35 // pred_fallthru
        _
    $region36: #{encoder_forward.11} parent=5 // pred_fallthru
      _
  $region6: #{encoder_forward.11} parent=0 // loop_footer
    %s12 = sadd.s32 1, %s8
  $region7: #{encoder_forward.11} parent=0 // loop_footer_branch
    %7 = sbr.rel target = $region3
  $region8: #{encoder_forward.11} parent=0 // loop_exit
    _

// kernel: encoder_forward.14
$region0: #{encoder_forward.14}
  #allocation0 [shape = 'u32[]', space=smem, size = 0x4, offset = 0x4, fixed_abs, tag = 'smem constant byte address 0x4 - core index']
  #allocation1 [shape = 'u32[72,128]{1,0:T(1,128)}', space=vmem, size = 0x9000, scoped, tag = 'internal scratch']
  #allocation2 [shape = 'f32[16,32]{1,0:T(8,128)}', space=vmem, size = 0x2000, scoped, tag = 'scratch operand']
  %s0 = inlined_call_operand.vmem [shape: bf16[16,64], index: 0, kind: input, shape index: {}]
  %s1 = inlined_call_operand.vmem [shape: bf16[64,32], index: 1, kind: input, shape index: {}]
  %s2 = inlined_call_operand.vmem [shape: f32[1,32], index: 2, kind: input, shape index: {}]
  %s3 = inlined_call_operand.vmem [shape: f32[16,32], index: 3, kind: input, shape index: {}]
  %s4 = inlined_call_operand.vmem [shape: f32[1,32], index: 4, kind: input, shape index: {}]
  %s5 = inlined_call_operand.vmem [shape: f32[1,32], index: 5, kind: input, shape index: {}]
  %s6 = inlined_call_operand.vmem [shape: f32[16,32], index: 6, kind: output, shape index: {}]
  %s7 = sld [smem:[#allocation0]]
  $region42: #{encoder_forward.14} parent=0
    _
  %s9 = ssub.s32 1, %s7
  %s10 = scalar_select 0, %s9, %s7
  // Predicated region
  $region2: #{encoder_forward.14} parent=0 // pred_check
    _
  $region3: #{encoder_forward.14} parent=0 // pred_check_branch
    %12 = sbr.rel (0) target = $region5
  $region4: #{encoder_forward.14} parent=0 // pred_region
    _
  $region5: #{encoder_forward.14} parent=0 // pred_fallthru
    _
  // Predicated region
  $region6: #{encoder_forward.14} parent=0 // pred_check
    _
  $region7: #{encoder_forward.14} parent=0 // pred_check_branch
    %14 = sbr.rel (0) target = $region9
  $region8: #{encoder_forward.14} parent=0 // pred_region
    _
  $region9: #{encoder_forward.14} parent=0 // pred_fallthru
    _
  // Predicated region
  $region10: #{encoder_forward.14} parent=0 // pred_check
    _
  $region11: #{encoder_forward.14} parent=0 // pred_check_branch
    %16 = sbr.rel (0) target = $region13
  $region12: #{encoder_forward.14} parent=0 // pred_region
    _
  $region13: #{encoder_forward.14} parent=0 // pred_fallthru
    _
  // Predicated region
  $region14: #{encoder_forward.14} parent=0 // pred_check
    _
  $region15: #{encoder_forward.14} parent=0 // pred_check_branch
    %18 = sbr.rel (0) target = $region17
  $region16: #{encoder_forward.14} parent=0 // pred_region
    _
  $region17: #{encoder_forward.14} parent=0 // pred_fallthru
    _
  // Predicated region
  $region18: #{encoder_forward.14} parent=0 // pred_check
    _
  $region19: #{encoder_forward.14} parent=0 // pred_check_branch
    %20 = sbr.rel (0) target = $region21
  $region20: #{encoder_forward.14} parent=0 // pred_region
    _
  $region21: #{encoder_forward.14} parent=0 // pred_fallthru
    _
  // Predicated region
  $region22: #{encoder_forward.14} parent=0 // pred_check
    _
  $region23: #{encoder_forward.14} parent=0 // pred_check_branch
    %22 = sbr.rel (0) target = $region25
  $region24: #{encoder_forward.14} parent=0 // pred_region
    _
  $region25: #{encoder_forward.14} parent=0 // pred_fallthru
    _
  %p24 = scmp.eq.s32.totalorder 0, 0
  // Predicated region
  $region26: #{encoder_forward.14} parent=0 // pred_check
    %p25 = pneg %p24
  $region27: #{encoder_forward.14} parent=0 // pred_check_branch
    %27 = sbr.rel (%p25) target = $region29
  $region28: #{encoder_forward.14} parent=0 // pred_region
    %vm28 = vcmask 261120
    %29 = vst.msk [vmem:[#allocation2] sm:$0xff] %vm28, 0.0
    %30 = vst.msk [vmem:[#allocation2 + $0x8] sm:$0xff] %vm28, 0.0
  $region29: #{encoder_forward.14} parent=0 // pred_fallthru
    _
  %v31 = vld [vmem:[#allocation2] sm:$0xff]
  %v32 = vld [vmem:[#allocation2 + $0x8] sm:$0xff]
  %v33 = vld [vmem:[%s0] sm:$0xf]
  %v34 = vld [vmem:[%s0 + $0x4] sm:$0xf]
  %v35 = vld [vmem:[%s1] sm:$0xf]
  %v36 = vld [vmem:[%s1 + $0x4] sm:$0xf]
  %v37 = vld [vmem:[%s1 + $0x8] sm:$0xf]
  %v38 = vld [vmem:[%s1 + $0xc] sm:$0xf]
  %v39 = vld [vmem:[%s1 + $0x10] sm:$0xf]
  %v40 = vld [vmem:[%s1 + $0x14] sm:$0xf]
  %v41 = vld [vmem:[%s1 + $0x18] sm:$0xf]
  %v42 = vld [vmem:[%s1 + $0x1c] sm:$0xf]
  %v45 = vunpack.c.l.b16 %v33
  %v46 = vunpack.c.l.b16 %v34
  %v47 = vpack.c.b16 %v46, %v45
  %v56 = vunpack.c.l.b16 %v35
  %v57 = vunpack.c.l.b16 %v36
  %v58 = vunpack.c.l.b16 %v37
  %v59 = vunpack.c.l.b16 %v38
  %v60 = vunpack.c.l.b16 %v39
  %v61 = vunpack.c.l.b16 %v40
  %v62 = vunpack.c.l.b16 %v41
  %v63 = vunpack.c.l.b16 %v42
  %v64 = vpack.c.b16 %v57, %v56
  %v65 = vpack.c.b16 %v59, %v58
  %v66 = vpack.c.b16 %v61, %v60
  %v67 = vpack.c.b16 %v63, %v62
  %vm72 = vcmask 523264
  %v74 = vsel %vm72, %v47, 0
  %76 = vmatpush.bf16.msra.mxu0 0
  %77 = vmatpush.bf16.msra.mxu0 0
  %78 = vmatpush.bf16.msra.mxu0 0
  %79 = vmatpush.bf16.msra.mxu0 0
  %80 = vmatpush.bf16.msra.mxu0 %v67
  %81 = vmatpush.bf16.msra.mxu0 %v66
  %82 = vmatpush.bf16.msra.mxu0 %v65
  %83 = vmatpush.bf16.msra.mxu0 %v64
  %84 = vmatmul.bf16.gmra.mxu0 %v74
  %v85 = vpop.f32.mrf.mxu0
  %v86 = vadd.f32 0.0, %v85
  %v87 = vpop.f32.mrf.mxu0
  %v88 = vadd.f32 0.0, %v87
  %89 = vdwg.mxu0
  %v90 = vadd.f32 %v31, %v86
  %v91 = vadd.f32 %v32, %v88
  %vm92 = vcmask 261120
  %93 = vst.msk [vmem:[#allocation2] sm:$0xff] %vm92, %v90
  %94 = vst.msk [vmem:[#allocation2 + $0x8] sm:$0xff] %vm92, %v91
  // Predicated region
  $region30: #{encoder_forward.14} parent=0 // pred_check
    %p95 = pneg %p24
  $region31: #{encoder_forward.14} parent=0 // pred_check_branch
    %97 = sbr.rel (%p95) target = $region33
  $region32: #{encoder_forward.14} parent=0 // pred_region
    %v98 = vld [vmem:[#allocation2] sm:$0xff]
    %v99 = vld [vmem:[#allocation2 + $0x8] sm:$0xff]
    %v100 = vld [vmem:[%s2] sm:$0x1]
    %v102 = vperm.slane %v100, 0
    %v104 = vadd.f32 %v98, %v102
    %v105 = vadd.f32 %v99, %v102
    %v106 = vmax.f32 %v104, 0.0
    %v107 = vmax.f32 %v105, 0.0
    %v108 = vld [vmem:[%s3] sm:$0xff]
    %v109 = vld [vmem:[%s3 + $0x8] sm:$0xff]
    %v110 = vadd.f32 %v106, %v108
    %v111 = vadd.f32 %v107, %v109
    %v112 = vsel %vm92, %v110, 0.0
    %113 = vadd.xlane.f32.xlu0 %v112
    %v114 = vpop.xlane.xlu0 %113
    %v115 = vsel %vm92, %v111, 0.0
    %116 = vadd.xlane.f32.xlu0 %v115
    %v117 = vpop.xlane.xlu0 %116
    %v118 = vrcp.pop 32.0
    %v119 = vmul.f32 32.0, %v118
    %v120 = vsub.f32 1.0, %v119
    %v121 = vmul.f32 %v118, %v120
    %v122 = vadd.f32 %v118, %v121
    %vm123 = vweird.f32 %v118
    %v124 = vsel %vm123, %v118, %v122
    %v125 = vmul.f32 %v114, %v124
    %v126 = vmul.f32 %v117, %v124
    %v127 = vsub.f32 %v110, %v125
    %v128 = vsub.f32 %v111, %v126
    %v129 = vmul.f32 %v127, %v127
    %v130 = vmul.f32 %v128, %v128
    %v131 = vsel %vm92, %v129, 0.0
    %132 = vadd.xlane.f32.xlu0 %v131
    %v133 = vpop.xlane.xlu0 %132
    %v134 = vsel %vm92, %v130, 0.0
    %135 = vadd.xlane.f32.xlu0 %v134
    %v136 = vpop.xlane.xlu0 %135
    %v137 = vmul.f32 %v133, %v124
    %v138 = vmul.f32 %v136, %v124
    %v139 = vadd.f32 %v137, 1e-05
    %v140 = vadd.f32 %v138, 1e-05
    %v141 = vrsqrt.pop %v139
    %v142 = vmul.f32 %v141, %v139
    %v143 = vmul.f32 %v142, %v141
    %v144 = vmul.f32 0.5, %v143
    %v145 = vsub.f32 1.5, %v144
    %v146 = vmul.f32 %v141, %v145
    %vm147 = vweird.f32 %v139
    %vm148 = vweird.f32 %v141
    %vm149 = vmor %vm147, %vm148
    %v150 = vsel %vm149, %v141, %v146
    %v151 = vrsqrt.pop %v140
    %v152 = vmul.f32 %v151, %v140
    %v153 = vmul.f32 %v152, %v151
    %v154 = vmul.f32 0.5, %v153
    %v155 = vsub.f32 1.5, %v154
    %v156 = vmul.f32 %v151, %v155
    %vm157 = vweird.f32 %v140
    %vm158 = vweird.f32 %v151
    %vm159 = vmor %vm157, %vm158
    %v160 = vsel %vm159, %v151, %v156
    %v161 = vmul.f32 %v127, %v150
    %v162 = vmul.f32 %v128, %v160
    %v163 = vld [vmem:[%s4] sm:$0x1]
    %v165 = vperm.slane %v163, 0
    %v167 = vmul.f32 %v161, %v165
    %v168 = vmul.f32 %v162, %v165
    %v169 = vld [vmem:[%s5] sm:$0x1]
    %v171 = vperm.slane %v169, 0
    %v173 = vadd.f32 %v167, %v171
    %v174 = vadd.f32 %v168, %v171
    %175 = vst.msk [vmem:[%s6] sm:$0xff] %vm92, %v173
    %176 = vst.msk [vmem:[%s6 + $0x8] sm:$0xff] %vm92, %v174
  $region33: #{encoder_forward.14} parent=0 // pred_fallthru
    _
  // Predicated region
  $region34: #{encoder_forward.14} parent=0 // pred_check
    _
  $region35: #{encoder_forward.14} parent=0 // pred_check_branch
    %178 = sbr.rel (0) target = $region37
  $region36: #{encoder_forward.14} parent=0 // pred_region
    _
  $region37: #{encoder_forward.14} parent=0 // pred_fallthru
    _
  // Predicated region
  $region38: #{encoder_forward.14} parent=0 // pred_check
    _
  $region39: #{encoder_forward.14} parent=0 // pred_check_branch
    %180 = sbr.rel (0) target = $region41
  $region40: #{encoder_forward.14} parent=0 // pred_region
    _
  $region41: #{encoder_forward.14} parent=0 // pred_fallthru
    _

// kernel: encoder_forward.19
$region0: #{encoder_forward.19}
  #allocation0 [shape = 'u32[]', space=smem, size = 0x4, offset = 0x4, fixed_abs, tag = 'smem constant byte address 0x4 - core index']
  #allocation1 [shape = 'u32[72,128]{1,0:T(1,128)}', space=vmem, size = 0x9000, scoped, tag = 'internal scratch']
  #allocation2 [shape = 'f32[16,32]{1,0:T(8,128)}', space=vmem, size = 0x2000, scoped, tag = 'scratch operand']
  %s0 = inlined_call_operand.vmem [shape: bf16[16,64], index: 0, kind: input, shape index: {}]
  %s1 = inlined_call_operand.vmem [shape: bf16[64,32], index: 1, kind: input, shape index: {}]
  %s2 = inlined_call_operand.vmem [shape: f32[1,32], index: 2, kind: input, shape index: {}]
  %s3 = inlined_call_operand.vmem [shape: f32[16,32], index: 3, kind: input, shape index: {}]
  %s4 = inlined_call_operand.vmem [shape: f32[1,32], index: 4, kind: input, shape index: {}]
  %s5 = inlined_call_operand.vmem [shape: f32[1,32], index: 5, kind: input, shape index: {}]
  %s6 = inlined_call_operand.hbm [shape: f32[16,32], index: 6, kind: output, shape index: {}]
  %s7 = sld [smem:[#allocation0]]
  $region42: #{encoder_forward.19} parent=0
    _
  %s9 = ssub.s32 1, %s7
  %s10 = scalar_select 0, %s9, %s7
  $region1: #{encoder_forward.19} parent=0
    #allocation3 [shape = 'u8[8192]{0}', space=vmem, size = 0x2000, scoped, tag = 'output window, operand 0, single buffered']
    #allocation4 [shape = 's32[1]{0}', space=sflag, size = 0x4, scoped, tag = 'scoped memory for encoder_forward.19']
    %11 = vsyncpa [#allocation4], 0
    // Predicated region
    $region2: #{encoder_forward.19} parent=1 // pred_check
      _
    $region3: #{encoder_forward.19} parent=1 // pred_check_branch
      %13 = sbr.rel (0) target = $region5
    $region4: #{encoder_forward.19} parent=1 // pred_region
      _
    $region5: #{encoder_forward.19} parent=1 // pred_fallthru
      _
    // Predicated region
    $region6: #{encoder_forward.19} parent=1 // pred_check
      _
    $region7: #{encoder_forward.19} parent=1 // pred_check_branch
      %15 = sbr.rel (0) target = $region9
    $region8: #{encoder_forward.19} parent=1 // pred_region
      _
    $region9: #{encoder_forward.19} parent=1 // pred_fallthru
      _
    // Predicated region
    $region10: #{encoder_forward.19} parent=1 // pred_check
      _
    $region11: #{encoder_forward.19} parent=1 // pred_check_branch
      %17 = sbr.rel (0) target = $region13
    $region12: #{encoder_forward.19} parent=1 // pred_region
      _
    $region13: #{encoder_forward.19} parent=1 // pred_fallthru
      _
    // Predicated region
    $region14: #{encoder_forward.19} parent=1 // pred_check
      _
    $region15: #{encoder_forward.19} parent=1 // pred_check_branch
      %19 = sbr.rel (0) target = $region17
    $region16: #{encoder_forward.19} parent=1 // pred_region
      _
    $region17: #{encoder_forward.19} parent=1 // pred_fallthru
      _
    // Predicated region
    $region18: #{encoder_forward.19} parent=1 // pred_check
      _
    $region19: #{encoder_forward.19} parent=1 // pred_check_branch
      %21 = sbr.rel (0) target = $region21
    $region20: #{encoder_forward.19} parent=1 // pred_region
      _
    $region21: #{encoder_forward.19} parent=1 // pred_fallthru
      _
    // Predicated region
    $region22: #{encoder_forward.19} parent=1 // pred_check
      _
    $region23: #{encoder_forward.19} parent=1 // pred_check_branch
      %23 = sbr.rel (0) target = $region25
    $region24: #{encoder_forward.19} parent=1 // pred_region
      _
    $region25: #{encoder_forward.19} parent=1 // pred_fallthru
      _
    %p25 = scmp.eq.s32.totalorder 0, 0
    // Predicated region
    $region26: #{encoder_forward.19} parent=1 // pred_check
      %p26 = pneg %p25
    $region27: #{encoder_forward.19} parent=1 // pred_check_branch
      %28 = sbr.rel (%p26) target = $region29
    $region28: #{encoder_forward.19} parent=1 // pred_region
      %vm29 = vcmask 261120
      %30 = vst.msk [vmem:[#allocation2] sm:$0xff] %vm29, 0.0
      %31 = vst.msk [vmem:[#allocation2 + $0x8] sm:$0xff] %vm29, 0.0
    $region29: #{encoder_forward.19} parent=1 // pred_fallthru
      _
    %v32 = vld [vmem:[#allocation2] sm:$0xff]
    %v33 = vld [vmem:[#allocation2 + $0x8] sm:$0xff]
    %v34 = vld [vmem:[%s0] sm:$0xf]
    %v35 = vld [vmem:[%s0 + $0x4] sm:$0xf]
    %v36 = vld [vmem:[%s1] sm:$0xf]
    %v37 = vld [vmem:[%s1 + $0x4] sm:$0xf]
    %v38 = vld [vmem:[%s1 + $0x8] sm:$0xf]
    %v39 = vld [vmem:[%s1 + $0xc] sm:$0xf]
    %v40 = vld [vmem:[%s1 + $0x10] sm:$0xf]
    %v41 = vld [vmem:[%s1 + $0x14] sm:$0xf]
    %v42 = vld [vmem:[%s1 + $0x18] sm:$0xf]
    %v43 = vld [vmem:[%s1 + $0x1c] sm:$0xf]
    %v46 = vunpack.c.l.b16 %v34
    %v47 = vunpack.c.l.b16 %v35
    %v48 = vpack.c.b16 %v47, %v46
    %v57 = vunpack.c.l.b16 %v36
    %v58 = vunpack.c.l.b16 %v37
    %v59 = vunpack.c.l.b16 %v38
    %v60 = vunpack.c.l.b16 %v39
    %v61 = vunpack.c.l.b16 %v40
    %v62 = vunpack.c.l.b16 %v41
    %v63 = vunpack.c.l.b16 %v42
    %v64 = vunpack.c.l.b16 %v43
    %v65 = vpack.c.b16 %v58, %v57
    %v66 = vpack.c.b16 %v60, %v59
    %v67 = vpack.c.b16 %v62, %v61
    %v68 = vpack.c.b16 %v64, %v63
    %vm73 = vcmask 523264
    %v75 = vsel %vm73, %v48, 0
    %77 = vmatpush.bf16.msra.mxu0 0
    %78 = vmatpush.bf16.msra.mxu0 0
    %79 = vmatpush.bf16.msra.mxu0 0
    %80 = vmatpush.bf16.msra.mxu0 0
    %81 = vmatpush.bf16.msra.mxu0 %v68
    %82 = vmatpush.bf16.msra.mxu0 %v67
    %83 = vmatpush.bf16.msra.mxu0 %v66
    %84 = vmatpush.bf16.msra.mxu0 %v65
    %85 = vmatmul.bf16.gmra.mxu0 %v75
    %v86 = vpop.f32.mrf.mxu0
    %v87 = vadd.f32 0.0, %v86
    %v88 = vpop.f32.mrf.mxu0
    %v89 = vadd.f32 0.0, %v88
    %90 = vdwg.mxu0
    %v91 = vadd.f32 %v32, %v87
    %v92 = vadd.f32 %v33, %v89
    %vm93 = vcmask 261120
    %94 = vst.msk [vmem:[#allocation2] sm:$0xff] %vm93, %v91
    %95 = vst.msk [vmem:[#allocation2 + $0x8] sm:$0xff] %vm93, %v92
    // Predicated region
    $region30: #{encoder_forward.19} parent=1 // pred_check
      %p96 = pneg %p25
    $region31: #{encoder_forward.19} parent=1 // pred_check_branch
      %98 = sbr.rel (%p96) target = $region33
    $region32: #{encoder_forward.19} parent=1 // pred_region
      %v99 = vld [vmem:[#allocation2] sm:$0xff]
      %v100 = vld [vmem:[#allocation2 + $0x8] sm:$0xff]
      %v101 = vld [vmem:[%s2] sm:$0x1]
      %v103 = vperm.slane %v101, 0
      %v105 = vadd.f32 %v99, %v103
      %v106 = vadd.f32 %v100, %v103
      %v107 = vmax.f32 %v105, 0.0
      %v108 = vmax.f32 %v106, 0.0
      %v109 = vld [vmem:[%s3] sm:$0xff]
      %v110 = vld [vmem:[%s3 + $0x8] sm:$0xff]
      %v111 = vadd.f32 %v107, %v109
      %v112 = vadd.f32 %v108, %v110
      %v113 = vsel %vm93, %v111, 0.0
      %114 = vadd.xlane.f32.xlu0 %v113
      %v115 = vpop.xlane.xlu0 %114
      %v116 = vsel %vm93, %v112, 0.0
      %117 = vadd.xlane.f32.xlu0 %v116
      %v118 = vpop.xlane.xlu0 %117
      %v119 = vrcp.pop 32.0
      %v120 = vmul.f32 32.0, %v119
      %v121 = vsub.f32 1.0, %v120
      %v122 = vmul.f32 %v119, %v121
      %v123 = vadd.f32 %v119, %v122
      %vm124 = vweird.f32 %v119
      %v125 = vsel %vm124, %v119, %v123
      %v126 = vmul.f32 %v115, %v125
      %v127 = vmul.f32 %v118, %v125
      %v128 = vsub.f32 %v111, %v126
      %v129 = vsub.f32 %v112, %v127
      %v130 = vmul.f32 %v128, %v128
      %v131 = vmul.f32 %v129, %v129
      %v132 = vsel %vm93, %v130, 0.0
      %133 = vadd.xlane.f32.xlu0 %v132
      %v134 = vpop.xlane.xlu0 %133
      %v135 = vsel %vm93, %v131, 0.0
      %136 = vadd.xlane.f32.xlu0 %v135
      %v137 = vpop.xlane.xlu0 %136
      %v138 = vmul.f32 %v134, %v125
      %v139 = vmul.f32 %v137, %v125
      %v140 = vadd.f32 %v138, 1e-05
      %v141 = vadd.f32 %v139, 1e-05
      %v142 = vrsqrt.pop %v140
      %v143 = vmul.f32 %v142, %v140
      %v144 = vmul.f32 %v143, %v142
      %v145 = vmul.f32 0.5, %v144
      %v146 = vsub.f32 1.5, %v145
      %v147 = vmul.f32 %v142, %v146
      %vm148 = vweird.f32 %v140
      %vm149 = vweird.f32 %v142
      %vm150 = vmor %vm148, %vm149
      %v151 = vsel %vm150, %v142, %v147
      %v152 = vrsqrt.pop %v141
      %v153 = vmul.f32 %v152, %v141
      %v154 = vmul.f32 %v153, %v152
      %v155 = vmul.f32 0.5, %v154
      %v156 = vsub.f32 1.5, %v155
      %v157 = vmul.f32 %v152, %v156
      %vm158 = vweird.f32 %v141
      %vm159 = vweird.f32 %v152
      %vm160 = vmor %vm158, %vm159
      %v161 = vsel %vm160, %v152, %v157
      %v162 = vmul.f32 %v128, %v151
      %v163 = vmul.f32 %v129, %v161
      %v164 = vld [vmem:[%s4] sm:$0x1]
      %v166 = vperm.slane %v164, 0
      %v168 = vmul.f32 %v162, %v166
      %v169 = vmul.f32 %v163, %v166
      %v170 = vld [vmem:[%s5] sm:$0x1]
      %v172 = vperm.slane %v170, 0
      %v174 = vadd.f32 %v168, %v172
      %v175 = vadd.f32 %v169, %v172
      %176 = vst.msk [vmem:[#allocation3] sm:$0xff] %vm93, %v174
      %177 = vst.msk [vmem:[#allocation3 + $0x8] sm:$0xff] %vm93, %v175
    $region33: #{encoder_forward.19} parent=1 // pred_fallthru
      _
    // Predicated region
    $region34: #{encoder_forward.19} parent=1 // pred_check
      _
    $region35: #{encoder_forward.19} parent=1 // pred_check_branch
      %179 = sbr.rel (0) target = $region37
    $region36: #{encoder_forward.19} parent=1 // pred_region
      %181 = vsyncadd [#allocation4], 0
      %s182 = sshll.u32 [#allocation3], 4
      %s183 = int_to_ptr.vmem [resolvable:$true] %s182
      %s184 = sshll.u32 %s6, 4
      %s185 = int_to_ptr.hbm [resolvable:$true] %s184
      %190 = dma.vmem_to_hbm [thread:$0]  %s183, 256, %s185, [#allocation4], 128, 128, 8
    $region37: #{encoder_forward.19} parent=1 // pred_fallthru
      _
    // Predicated region
    $region38: #{encoder_forward.19} parent=1 // pred_check
      _
    $region39: #{encoder_forward.19} parent=1 // pred_check_branch
      %192 = sbr.rel (0) target = $region41
    $region40: #{encoder_forward.19} parent=1 // pred_region
      %194 = dma.done [#allocation4], 256
    $region41: #{encoder_forward.19} parent=1 // pred_fallthru
      _
    %195 = vsyncpa [#allocation4], 1

</llo_original>
